<compile_context>
chip_gen: v5e
topology: v5e:2x2
jax: 0.10.0
libtpu: 0.0.40
codegen_flags: <defaults>
</compile_context>

<pallas_src>
import jax
import jax.numpy as jnp
from jax.experimental import pallas as pl
from jax.experimental.pallas import tpu as pltpu

_MIB = 1 << 20


def _round_up(x, m):
    return ((x + m - 1) // m) * m


def _cdiv(a, b):
    return -(-a // b)


def _pick_tile(total, want):
    """Largest multiple of 128 <= want that divides `total` (total % 128 == 0)."""
    want = max(128, min(want, total))
    want = (want // 128) * 128
    for t in range(want, 127, -128):
        if total % t == 0:
            return t
    return 128


# ---------------------------------------------------------------------------
# Kernels
# ---------------------------------------------------------------------------

def _mlp_kernel_nres(x_ref, w1_ref, b1_ref, w2_ref, b2_ref, o_ref, h_ref):
    """N-tiled structure (whole K per batch tile, hidden cached in VMEM).

    Grid: (batch_tiles, n_tiles).  Per step:
      x_ref : [TB, Kp]  (input dtype; DMA'd once per batch tile)
      w1_ref: [Kp, Hp]  (compute dtype, resident / single-buffered)
      b1_ref: [1,  Hp]  (f32, resident)
      w2_ref: [Hp, TN]  (compute dtype, streamed over N tiles)
      b2_ref: [1,  TN]  (f32)
      o_ref : [TB, TN]  (lane-dense output tile)
      h_ref : [TB, Hp]  (compute-dtype scratch; persists across the N sweep)
    """
    j = pl.program_id(1)

    @pl.when(j == 0)
    def _():
        # First layer once per batch tile: MXU matmul (f32 acc), bias + ReLU
        # on the VPU, cached in compute dtype for the N sweep.
        h = jnp.dot(x_ref[...].astype(w1_ref.dtype), w1_ref[...],
                    preferred_element_type=jnp.float32)
        h_ref[...] = jnp.maximum(h + b1_ref[...], 0.0).astype(h_ref.dtype)

    y = jnp.dot(h_ref[...], w2_ref[...], preferred_element_type=jnp.float32)
    o_ref[...] = (y + b2_ref[...]).astype(o_ref.dtype)


def _mlp_kernel_kres(x_ref, w1_ref, b1_ref, w2_ref, b2_ref, o_ref, acc_ref):
    """K-tiled structure (f32 accumulator over K; W2 / output resident).

    Grid: (batch_tiles, k_tiles).
    """
    k = pl.program_id(1)

    @pl.when(k == 0)
    def _():
        acc_ref[...] = jnp.zeros_like(acc_ref)

    acc_ref[...] += jnp.dot(x_ref[...].astype(w1_ref.dtype), w1_ref[...],
                            preferred_element_type=jnp.float32)

    @pl.when(k == pl.num_programs(1) - 1)
    def _():
        h = jnp.maximum(acc_ref[...] + b1_ref[...], 0.0)
        y = jnp.dot(h.astype(w2_ref.dtype), w2_ref[...],
                    preferred_element_type=jnp.float32)
        o_ref[...] = (y + b2_ref[...]).astype(o_ref.dtype)


# ---------------------------------------------------------------------------
# Host-side wrappers
# ---------------------------------------------------------------------------

def prepare_params(w1, b1, w2, b2, *, compute_dtype=jnp.bfloat16):
    """One-time parameter prep (hoisted out of the hot path).

    Transposes torch nn.Linear [out, in] weights to [in, out], zero-pads
    D_in / H / D_out to multiples of 128, and casts matmul operands to
    `compute_dtype` (bf16 default; biases stay f32 for the epilogue).
    """
    H, D_in = w1.shape
    D_out, H2 = w2.shape
    assert H2 == H and b1.shape == (H,) and b2.shape == (D_out,)

    Kp = _round_up(D_in, 128)
    Hp = _round_up(H, 128)
    Np = _round_up(D_out, 128)

    w1_t = jnp.pad(jnp.transpose(w1), ((0, Kp - D_in), (0, Hp - H)))
    w2_t = jnp.pad(jnp.transpose(w2), ((0, Hp - H), (0, Np - D_out)))
    b1_p = jnp.pad(b1, (0, Hp - H)).astype(jnp.float32).reshape(1, Hp)
    b2_p = jnp.pad(b2, (0, Np - D_out)).astype(jnp.float32).reshape(1, Np)

    return {
        "w1_t": w1_t.astype(compute_dtype),
        "b1": b1_p,
        "w2_t": w2_t.astype(compute_dtype),
        "b2": b2_p,
        "d_in": D_in,
        "d_out": D_out,
    }


def abstract_network_forward(x, params, *, tile_b=256, tile_k=512, tile_n=512,
                             out_dtype=jnp.float32,
                             vmem_budget_bytes=40 * _MIB, _force=None):
    """Forward pass: x [B, D_in] -> [B, D_out] (out_dtype, default f32)."""
    w1_t, b1_p = params["w1_t"], params["b1"]
    w2_t, b2_p = params["w2_t"], params["b2"]
    d_in, d_out = params["d_in"], params["d_out"]

    B, Dx = x.shape
    assert Dx == d_in
    Kp, Hp = w1_t.shape
    Np = w2_t.shape[1]
    compute_dtype = w1_t.dtype

    xb = jnp.dtype(x.dtype).itemsize
    cb = jnp.dtype(compute_dtype).itemsize
    ob = jnp.dtype(out_dtype).itemsize

    # Batch tile: multiple of 16 sublanes (bf16 packs 16 rows per vreg); use at
    # least two tiles when B allows so the "parallel" axis feeds both v7x TCs.
    n_btiles = max(2 if B > 16 else 1, _cdiv(B, tile_b))
    tb = _round_up(_cdiv(B, n_btiles), 16)

    # ---- structure selection by VMEM footprint ----
    tn = _pick_tile(Np, tile_n)
    nres_vmem = (2 * tb * Kp * xb        # x tile (double-buffered)
                 + Kp * Hp * cb          # W1 resident (single-buffered)
                 + tb * Hp * cb          # h scratch
                 + 2 * Hp * tn * cb      # W2 tile (double-buffered)
                 + 2 * tb * tn * ob      # out tile (double-buffered)
                 + (Hp + Np) * 4)        # biases

    use_nres = nres_vmem <= vmem_budget_bytes
    if _force == "nres":
        use_nres = True
    elif _force == "kres":
        use_nres = False

    tk = None
    if use_nres:
        est_vmem = nres_vmem
    else:
        tk = _pick_tile(Kp, tile_k)

        def kres_vmem(tb_, tk_):
            return (2 * tb_ * tk_ * xb + 2 * tk_ * Hp * cb + Hp * Np * cb
                    + 2 * tb_ * Np * ob + tb_ * Hp * 4 + (Hp + Np) * 4)

        while kres_vmem(tb, tk) > vmem_budget_bytes and tk > 128:
            tk = _pick_tile(Kp, tk - 128)
        while kres_vmem(tb, tk) > vmem_budget_bytes:
            new_tb = _round_up(tb // 2, 16)
            if new_tb >= tb:
                break
            tb = new_tb
        # TODO(synk): extremely large H *and* D_out would need an extra N grid
        # axis here; the K-tiled path keeps W2 / the output tile resident.
        est_vmem = kres_vmem(tb, tk)

    Bp = _round_up(B, tb)

    xp = x
    if (Bp, Kp) != (B, d_in):
        # Zero-pad only when needed; keep the input dtype (per-tile cast in
        # the kernel avoids a full HBM pad+cast rewrite of the activations).
        xp = jnp.pad(x, ((0, Bp - B), (0, Kp - d_in)))

    # Covers v5e's 16 MiB scoped default; stays under v7x's 64 MiB physical.
    vmem_limit = int(min(60 * _MIB, max(24 * _MIB, 2 * est_vmem)))

    nbt = Bp // tb
    flops = 2 * Bp * (Kp * Hp + Hp * Np)
    if use_nres:
        bytes_accessed = (Bp * Kp * xb + Kp * Hp * cb + nbt * Hp * Np * cb
                          + (Hp + Np) * 4 + Bp * Np * ob)
    else:
        bytes_accessed = (Bp * Kp * xb + nbt * Kp * Hp * cb + Hp * Np * cb
                          + (Hp + Np) * 4 + Bp * Np * ob)
    cost = pl.CostEstimate(flops=flops, transcendentals=0,
                           bytes_accessed=bytes_accessed)

    def _run(single_buffer_constants):
        const_kw = ({"pipeline_mode": pl.Buffered(1)}
                    if single_buffer_constants else {})
        if use_nres:
            kernel = _mlp_kernel_nres
            grid = (Bp // tb, Np // tn)
            in_specs = [
                pl.BlockSpec((tb, Kp), lambda i, j: (i, 0)),                 # x
                pl.BlockSpec((Kp, Hp), lambda i, j: (0, 0), **const_kw),     # W1
                pl.BlockSpec((1, Hp), lambda i, j: (0, 0), **const_kw),      # b1
                pl.BlockSpec((Hp, tn), lambda i, j: (0, j)),                 # W2 tile
                pl.BlockSpec((1, tn), lambda i, j: (0, j)),                  # b2 tile
            ]
            out_specs = pl.BlockSpec((tb, tn), lambda i, j: (i, j))
            scratch = [pltpu.VMEM((tb, Hp), compute_dtype)]                  # h cache
        else:
            kernel = _mlp_kernel_kres
            grid = (Bp // tb, Kp // tk)
            in_specs = [
                pl.BlockSpec((tb, tk), lambda i, k: (i, k)),                 # x tile
                pl.BlockSpec((tk, Hp), lambda i, k: (k, 0)),                 # W1 tile
                pl.BlockSpec((1, Hp), lambda i, k: (0, 0), **const_kw),      # b1
                pl.BlockSpec((Hp, Np), lambda i, k: (0, 0), **const_kw),     # W2
                pl.BlockSpec((1, Np), lambda i, k: (0, 0), **const_kw),      # b2
            ]
            out_specs = pl.BlockSpec((tb, Np), lambda i, k: (i, 0))
            scratch = [pltpu.VMEM((tb, Hp), jnp.float32)]                    # f32 acc

        return pl.pallas_call(
            kernel,
            out_shape=jax.ShapeDtypeStruct((Bp, Np), out_dtype),
            grid_spec=pltpu.PrefetchScalarGridSpec(
                num_scalar_prefetch=0,
                grid=grid,
                in_specs=in_specs,
                out_specs=out_specs,
                scratch_shapes=scratch,
            ),
            compiler_params=pltpu.CompilerParams(
                dimension_semantics=("parallel", "arbitrary"),
                vmem_limit_bytes=vmem_limit),
            cost_estimate=cost,
        )(xp, w1_t, b1_p, w2_t, b2_p)

    try:
        out = _run(True)
    except Exception:
        # pipeline_mode=pl.Buffered(1) unsupported on this JAX/Mosaic version:
        # fall back to default double-buffering of the constant blocks.
        out = _run(False)

    if Bp != B or Np != d_out:
        out = out[:B, :d_out]
    return out


def _reference_forward(x, w1, b1, w2, b2):
    h = jnp.maximum(x @ w1.T + b1, 0.0)
    return h @ w2.T + b2


if __name__ == "__main__":
    # Small but non-degenerate shapes: batch tiling (2 tiles), K multiple of
    # 128, H / D_out padded to 128 lanes.
    B, D_in, H, D_out = 256, 384, 96, 32

    key = jax.random.PRNGKey(0)
    kx, k1, kb1, k2, kb2, k3, kb3 = jax.random.split(key, 7)

    x = jax.random.normal(kx, (B, D_in), dtype=jnp.float32)
    # torch nn.Linear convention: W is [out, in].
    w1 = jax.random.normal(k1, (H, D_in), dtype=jnp.float32) * 0.1
    b1 = jax.random.normal(kb1, (H,), dtype=jnp.float32) * 0.1
    w2 = jax.random.normal(k2, (D_out, H), dtype=jnp.float32) * 0.1
    b2 = jax.random.normal(kb2, (D_out,), dtype=jnp.float32) * 0.1

    y_ref = _reference_forward(x, w1, b1, w2, b2)

    # 1) Default path (N-resident fast path), bf16 operands / f32 accumulation.
    params_bf16 = prepare_params(w1, b1, w2, b2, compute_dtype=jnp.bfloat16)
    y_bf16 = jax.block_until_ready(abstract_network_forward(x, params_bf16))
    assert y_bf16.shape == (B, D_out)
    assert jnp.allclose(y_bf16, y_ref, atol=5e-2, rtol=5e-2), "bf16 mismatch"

    # 2) f32 operand path (TPU default matmul precision -> loose tolerance).
    params_f32 = prepare_params(w1, b1, w2, b2, compute_dtype=jnp.float32)
    y_f32 = jax.block_until_ready(abstract_network_forward(x, params_f32))
    assert jnp.allclose(y_f32, y_ref, atol=2e-2, rtol=2e-2), "f32 mismatch"

    # 3) K-tiled accumulator path (forced, 3 K tiles) for large-H/K regimes.
    y_kres = jax.block_until_ready(
        abstract_network_forward(x, params_bf16, tile_k=128, _force="kres"))
    assert jnp.allclose(y_kres, y_ref, atol=5e-2, rtol=5e-2), "kres mismatch"

    # 4) N-tiled path with multiple output tiles (hidden cache reused over j).
    w2b = jax.random.normal(k3, (300, H), dtype=jnp.float32) * 0.1
    b2b = jax.random.normal(kb3, (300,), dtype=jnp.float32) * 0.1
    y_ref_b = _reference_forward(x, w1, b1, w2b, b2b)
    params_b = prepare_params(w1, b1, w2b, b2b, compute_dtype=jnp.bfloat16)
    y_ntile = jax.block_until_ready(
        abstract_network_forward(x, params_b, tile_n=128))
    assert y_ntile.shape == (B, 300)
    assert jnp.allclose(y_ntile, y_ref_b, atol=5e-2, rtol=5e-2), "n-tile mismatch"

    # 5) Small-batch path (batch tile rounds up to 16 sublanes).
    y_small = jax.block_until_ready(
        abstract_network_forward(x[:8], params_bf16))
    assert jnp.allclose(y_small, y_ref[:8], atol=5e-2, rtol=5e-2), "small-B mismatch"

    print("KERNEL_OK")
</pallas_src>

<mosaic_0001>
module attributes {stable_mosaic.version = 11 : i64} {
  func.func @_mlp_kernel_nres(%arg0: i32, %arg1: i32, %arg2: memref<128x384xf32, #tpu.memory_space<vmem>>, %arg3: memref<384x128xbf16, #tpu.memory_space<vmem>>, %arg4: memref<1x128xf32, #tpu.memory_space<vmem>>, %arg5: memref<128x128xbf16, #tpu.memory_space<vmem>>, %arg6: memref<1x128xf32, #tpu.memory_space<vmem>>, %arg7: memref<128x128xf32, #tpu.memory_space<vmem>>, %arg8: memref<128x128xbf16, #tpu.memory_space<vmem>>) attributes {dimension_semantics = [#tpu.dimension_semantics<parallel>, #tpu.dimension_semantics<arbitrary>], iteration_bounds = array<i64: 2, 1>, scalar_prefetch = 0 : i64, scratch_operands = 1 : i64, tpu.core_type = #tpu.core_type<tc>, window_params = [{transform_indices = @transform_0, window_bounds = array<i64: 128, 384>}, {pipeline_mode = #tpu.pipeline_mode<synchronous>, transform_indices = @transform_1, window_bounds = array<i64: 384, 128>}, {pipeline_mode = #tpu.pipeline_mode<synchronous>, transform_indices = @transform_2, window_bounds = array<i64: 1, 128>}, {transform_indices = @transform_3, window_bounds = array<i64: 128, 128>}, {transform_indices = @transform_4, window_bounds = array<i64: 1, 128>}, {transform_indices = @transform_5, window_bounds = array<i64: 128, 128>}]} {
    %c0_i32 = arith.constant 0 : i32
    %0 = arith.cmpi eq, %arg1, %c0_i32 : i32
    %1 = arith.extui %0 : i1 to i32
    %c0_i32_0 = arith.constant 0 : i32
    %2 = arith.cmpi ne, %1, %c0_i32_0 : i32
    scf.if %2 {
      %c0_8 = arith.constant 0 : index
      %c0_9 = arith.constant 0 : index
      %10 = vector.load %arg2[%c0_8, %c0_9] : memref<128x384xf32, #tpu.memory_space<vmem>>, vector<128x384xf32>
      %11 = arith.truncf %10 : vector<128x384xf32> to vector<128x384xbf16>
      %c0_10 = arith.constant 0 : index
      %c0_11 = arith.constant 0 : index
      %12 = vector.load %arg3[%c0_10, %c0_11] : memref<384x128xbf16, #tpu.memory_space<vmem>>, vector<384x128xbf16>
      %cst_12 = arith.constant dense<0.000000e+00> : vector<128x128xf32>
      %13 = tpu.matmul %11, %12, %cst_12 {dimension_numbers = #tpu.dot_dimension_numbers<[1], [0], [0], [1], [0, 0, 1, 1], [], []>} : vector<128x384xbf16>, vector<384x128xbf16>, vector<128x128xf32> -> vector<128x128xf32>
      %c0_13 = arith.constant 0 : index
      %c0_14 = arith.constant 0 : index
      %14 = vector.load %arg4[%c0_13, %c0_14] : memref<1x128xf32, #tpu.memory_space<vmem>>, vector<1x128xf32>
      %15 = vector.broadcast %14 : vector<1x128xf32> to vector<128x128xf32>
      %16 = arith.addf %13, %15 : vector<128x128xf32>
      %cst_15 = arith.constant 0.000000e+00 : f32
      %17 = vector.broadcast %cst_15 : f32 to vector<128x128xf32>
      %18 = arith.maximumf %16, %17 : vector<128x128xf32>
      %19 = arith.truncf %18 : vector<128x128xf32> to vector<128x128xbf16>
      %c0_16 = arith.constant 0 : index
      %c0_17 = arith.constant 0 : index
      %20 = vector.load %arg8[%c0_16, %c0_17] : memref<128x128xbf16, #tpu.memory_space<vmem>>, vector<128x128xbf16>
      tpu.vector_store %arg8[%c0_16, %c0_17], %19 {strides = array<i32>} : memref<128x128xbf16, #tpu.memory_space<vmem>>, vector<128x128xbf16>,
    } else {
    }
    %c0 = arith.constant 0 : index
    %c0_1 = arith.constant 0 : index
    %3 = vector.load %arg8[%c0, %c0_1] : memref<128x128xbf16, #tpu.memory_space<vmem>>, vector<128x128xbf16>
    %c0_2 = arith.constant 0 : index
    %c0_3 = arith.constant 0 : index
    %4 = vector.load %arg5[%c0_2, %c0_3] : memref<128x128xbf16, #tpu.memory_space<vmem>>, vector<128x128xbf16>
    %cst = arith.constant dense<0.000000e+00> : vector<128x128xf32>
    %5 = tpu.matmul %3, %4, %cst {dimension_numbers = #tpu.dot_dimension_numbers<[1], [0], [0], [1], [0, 0, 1, 1], [], []>} : vector<128x128xbf16>, vector<128x128xbf16>, vector<128x128xf32> -> vector<128x128xf32>
    %c0_4 = arith.constant 0 : index
    %c0_5 = arith.constant 0 : index
    %6 = vector.load %arg6[%c0_4, %c0_5] : memref<1x128xf32, #tpu.memory_space<vmem>>, vector<1x128xf32>
    %7 = vector.broadcast %6 : vector<1x128xf32> to vector<128x128xf32>
    %8 = arith.addf %5, %7 : vector<128x128xf32>
    %c0_6 = arith.constant 0 : index
    %c0_7 = arith.constant 0 : index
    %9 = vector.load %arg7[%c0_6, %c0_7] : memref<128x128xf32, #tpu.memory_space<vmem>>, vector<128x128xf32>
    tpu.vector_store %arg7[%c0_6, %c0_7], %8 {strides = array<i32>} : memref<128x128xf32, #tpu.memory_space<vmem>>, vector<128x128xf32>,
    return
  }
  func.func @transform_0(%arg0: i32, %arg1: i32) -> (i32, i32) {
    %c0_i32 = arith.constant 0 : i32
    %c0_i32_0 = arith.constant 0 : i32
    return %arg0, %c0_i32 : i32, i32
  }
  func.func @transform_1(%arg0: i32, %arg1: i32) -> (i32, i32) {
    %c0_i32 = arith.constant 0 : i32
    %c0_i32_0 = arith.constant 0 : i32
    %c0_i32_1 = arith.constant 0 : i32
    return %c0_i32, %c0_i32_0 : i32, i32
  }
  func.func @transform_2(%arg0: i32, %arg1: i32) -> (i32, i32) {
    %c0_i32 = arith.constant 0 : i32
    %c0_i32_0 = arith.constant 0 : i32
    %c0_i32_1 = arith.constant 0 : i32
    return %c0_i32, %c0_i32_0 : i32, i32
  }
  func.func @transform_3(%arg0: i32, %arg1: i32) -> (i32, i32) {
    %c0_i32 = arith.constant 0 : i32
    %c0_i32_0 = arith.constant 0 : i32
    return %c0_i32, %arg1 : i32, i32
  }
  func.func @transform_4(%arg0: i32, %arg1: i32) -> (i32, i32) {
    %c0_i32 = arith.constant 0 : i32
    %c0_i32_0 = arith.constant 0 : i32
    return %c0_i32, %arg1 : i32, i32
  }
  func.func @transform_5(%arg0: i32, %arg1: i32) -> (i32, i32) {
    %c0_i32 = arith.constant 0 : i32
    return %arg0, %arg1 : i32, i32
  }
}

module attributes {stable_mosaic.version = 11 : i64} {
  func.func @_mlp_kernel_nres(%arg0: i32, %arg1: i32, %arg2: memref<128x384xf32, #tpu.memory_space<vmem>>, %arg3: memref<384x128xbf16, #tpu.memory_space<vmem>>, %arg4: memref<1x128xf32, #tpu.memory_space<vmem>>, %arg5: memref<128x128xbf16, #tpu.memory_space<vmem>>, %arg6: memref<1x128xf32, #tpu.memory_space<vmem>>, %arg7: memref<128x128xf32, #tpu.memory_space<vmem>>, %arg8: memref<128x128xbf16, #tpu.memory_space<vmem>>) attributes {dimension_semantics = [#tpu.dimension_semantics<parallel>, #tpu.dimension_semantics<arbitrary>], iteration_bounds = array<i64: 2, 1>, scalar_prefetch = 0 : i64, scratch_operands = 1 : i64, tpu.core_type = #tpu.core_type<tc>, window_params = [{transform_indices = @transform_0, window_bounds = array<i64: 128, 384>}, {pipeline_mode = #tpu.pipeline_mode<synchronous>, transform_indices = @transform_1, window_bounds = array<i64: 384, 128>}, {pipeline_mode = #tpu.pipeline_mode<synchronous>, transform_indices = @transform_2, window_bounds = array<i64: 1, 128>}, {transform_indices = @transform_3, window_bounds = array<i64: 128, 128>}, {transform_indices = @transform_4, window_bounds = array<i64: 1, 128>}, {transform_indices = @transform_5, window_bounds = array<i64: 128, 128>}]} {
    %c0_i32 = arith.constant 0 : i32
    %0 = arith.cmpi eq, %arg1, %c0_i32 : i32
    %1 = arith.extui %0 : i1 to i32
    %c0_i32_0 = arith.constant 0 : i32
    %2 = arith.cmpi ne, %1, %c0_i32_0 : i32
    scf.if %2 {
      %c0_8 = arith.constant 0 : index
      %c0_9 = arith.constant 0 : index
      %10 = vector.load %arg2[%c0_8, %c0_9] : memref<128x384xf32, #tpu.memory_space<vmem>>, vector<128x384xf32>
      %11 = arith.truncf %10 : vector<128x384xf32> to vector<128x384xbf16>
      %c0_10 = arith.constant 0 : index
      %c0_11 = arith.constant 0 : index
      %12 = vector.load %arg3[%c0_10, %c0_11] : memref<384x128xbf16, #tpu.memory_space<vmem>>, vector<384x128xbf16>
      %cst_12 = arith.constant dense<0.000000e+00> : vector<128x128xf32>
      %13 = tpu.matmul %11, %12, %cst_12 {dimension_numbers = #tpu.dot_dimension_numbers<[1], [0], [0], [1], [0, 0, 1, 1], [], []>} : vector<128x384xbf16>, vector<384x128xbf16>, vector<128x128xf32> -> vector<128x128xf32>
      %c0_13 = arith.constant 0 : index
      %c0_14 = arith.constant 0 : index
      %14 = vector.load %arg4[%c0_13, %c0_14] : memref<1x128xf32, #tpu.memory_space<vmem>>, vector<1x128xf32>
      %15 = vector.broadcast %14 : vector<1x128xf32> to vector<128x128xf32>
      %16 = arith.addf %13, %15 : vector<128x128xf32>
      %cst_15 = arith.constant 0.000000e+00 : f32
      %17 = vector.broadcast %cst_15 : f32 to vector<128x128xf32>
      %18 = arith.maximumf %16, %17 : vector<128x128xf32>
      %19 = arith.truncf %18 : vector<128x128xf32> to vector<128x128xbf16>
      %c0_16 = arith.constant 0 : index
      %c0_17 = arith.constant 0 : index
      %20 = vector.load %arg8[%c0_16, %c0_17] : memref<128x128xbf16, #tpu.memory_space<vmem>>, vector<128x128xbf16>
      tpu.vector_store %arg8[%c0_16, %c0_17], %19 {strides = array<i32>} : memref<128x128xbf16, #tpu.memory_space<vmem>>, vector<128x128xbf16>,
    } else {
    }
    %c0 = arith.constant 0 : index
    %c0_1 = arith.constant 0 : index
    %3 = vector.load %arg8[%c0, %c0_1] : memref<128x128xbf16, #tpu.memory_space<vmem>>, vector<128x128xbf16>
    %c0_2 = arith.constant 0 : index
    %c0_3 = arith.constant 0 : index
    %4 = vector.load %arg5[%c0_2, %c0_3] : memref<128x128xbf16, #tpu.memory_space<vmem>>, vector<128x128xbf16>
    %cst = arith.constant dense<0.000000e+00> : vector<128x128xf32>
    %5 = tpu.matmul %3, %4, %cst {dimension_numbers = #tpu.dot_dimension_numbers<[1], [0], [0], [1], [0, 0, 1, 1], [], []>} : vector<128x128xbf16>, vector<128x128xbf16>, vector<128x128xf32> -> vector<128x128xf32>
    %c0_4 = arith.constant 0 : index
    %c0_5 = arith.constant 0 : index
    %6 = vector.load %arg6[%c0_4, %c0_5] : memref<1x128xf32, #tpu.memory_space<vmem>>, vector<1x128xf32>
    %7 = vector.broadcast %6 : vector<1x128xf32> to vector<128x128xf32>
    %8 = arith.addf %5, %7 : vector<128x128xf32>
    %c0_6 = arith.constant 0 : index
    %c0_7 = arith.constant 0 : index
    %9 = vector.load %arg7[%c0_6, %c0_7] : memref<128x128xf32, #tpu.memory_space<vmem>>, vector<128x128xf32>
    tpu.vector_store %arg7[%c0_6, %c0_7], %8 {strides = array<i32>} : memref<128x128xf32, #tpu.memory_space<vmem>>, vector<128x128xf32>,
    return
  }
  func.func @transform_0(%arg0: i32, %arg1: i32) -> (i32, i32) {
    %c0_i32 = arith.constant 0 : i32
    %c0_i32_0 = arith.constant 0 : i32
    return %arg0, %c0_i32 : i32, i32
  }
  func.func @transform_1(%arg0: i32, %arg1: i32) -> (i32, i32) {
    %c0_i32 = arith.constant 0 : i32
    %c0_i32_0 = arith.constant 0 : i32
    %c0_i32_1 = arith.constant 0 : i32
    return %c0_i32, %c0_i32_0 : i32, i32
  }
  func.func @transform_2(%arg0: i32, %arg1: i32) -> (i32, i32) {
    %c0_i32 = arith.constant 0 : i32
    %c0_i32_0 = arith.constant 0 : i32
    %c0_i32_1 = arith.constant 0 : i32
    return %c0_i32, %c0_i32_0 : i32, i32
  }
  func.func @transform_3(%arg0: i32, %arg1: i32) -> (i32, i32) {
    %c0_i32 = arith.constant 0 : i32
    %c0_i32_0 = arith.constant 0 : i32
    return %c0_i32, %arg1 : i32, i32
  }
  func.func @transform_4(%arg0: i32, %arg1: i32) -> (i32, i32) {
    %c0_i32 = arith.constant 0 : i32
    %c0_i32_0 = arith.constant 0 : i32
    return %c0_i32, %arg1 : i32, i32
  }
  func.func @transform_5(%arg0: i32, %arg1: i32) -> (i32, i32) {
    %c0_i32 = arith.constant 0 : i32
    return %arg0, %arg1 : i32, i32
  }
}

</mosaic_0001>

<llo_original>
// kernel: tpu_custom_call.1
$region0: #{tpu_custom_call.1}
  #allocation0 [shape = 'u32[]', space=smem, size = 0x4, offset = 0x4, fixed_abs, tag = 'smem constant byte address 0x4 - core index']
  #allocation1 [shape = 'u32[72,128]{1,0:T(1,128)}', space=vmem, size = 0x9000, scoped, tag = 'internal scratch']
  #allocation2 [shape = 'bf16[128,128]{1,0:T(8,128)(2,1)}', space=vmem, size = 0x8000, scoped, tag = 'scratch operand']
  %s0 = inlined_call_operand.hbm [shape: f32[256,384], index: 0, kind: input, shape index: {}]
  %s1 = inlined_call_operand.hbm [shape: bf16[384,128], index: 1, kind: input, shape index: {}]
  %s2 = inlined_call_operand.vmem [shape: f32[1,128], index: 2, kind: input, shape index: {}]
  %s3 = inlined_call_operand.hbm [shape: bf16[128,128], index: 3, kind: input, shape index: {}]
  %s4 = inlined_call_operand.vmem [shape: f32[1,128], index: 4, kind: input, shape index: {}]
  %s5 = inlined_call_operand.hbm [shape: f32[256,128], index: 5, kind: output, shape index: {}]
  %s6 = sld [smem:[#allocation0]]
  $region69: #{tpu_custom_call.1} parent=0
    _
  %s8 = ssub.s32 1, %s6
  %s9 = scalar_select 0, %s8, %s6
  $region1: #{tpu_custom_call.1} parent=0
    #allocation3 [shape = 'u8[393216]{0}', space=vmem, size = 0x60000, scoped, tag = 'input window, operand 0']
    #allocation4 [shape = 's32[2]{0}', space=sflag, size = 0x8, scoped, tag = 'scoped memory for tpu_custom_call.1']
    #allocation5 [shape = 's32[2]{0}', space=sflag, size = 0x8, scoped, tag = 'scoped memory for tpu_custom_call.1']
    #allocation6 [shape = 'u8[98304]{0}', space=vmem, size = 0x18000, scoped, tag = 'input window, operand 1, single buffered']
    #allocation7 [shape = 's32[1]{0}', space=sflag, size = 0x4, scoped, tag = 'scoped memory for tpu_custom_call.1']
    #allocation8 [shape = 'u8[32768]{0}', space=vmem, size = 0x8000, scoped, tag = 'input window, operand 3, single buffered']
    #allocation9 [shape = 'u8[131072]{0}', space=vmem, size = 0x20000, scoped, tag = 'output window, operand 0']
    %10 = vsyncpa [#allocation4], 0
    %s11 = scalar_lea.sflag [#allocation4], 1
    %12 = vsyncpa %s11, 0
    %13 = vsyncpa [#allocation7], 0
    %14 = vsyncpa [#allocation5], 0
    %s15 = scalar_lea.sflag [#allocation5], 1
    %16 = vsyncpa %s15, 0
    loop: start=0, step=1, limit=4
    $region2: #{tpu_custom_call.1} parent=1 // loop_pre_header
      _
    $region3: #{tpu_custom_call.1} parent=1 // loop_header
      %s18 = sphi 0, %s22
      %p19 = scmp.ge.s32.totalorder %s18, 4
      %s25 = sphi 0, %s37
      %s26 = sphi 0, %s33
      %s27 = sphi 0, %s25
      %s28 = sphi 0, %s26
      %s29 = sphi 0, %s27
      %s30 = sphi 0, %s28
      %s40 = sphi 0, %s42
      %s43 = sphi 0, %s40
      %s44 = sphi 0, %s43
      %s60 = sphi 0, %s44
      %s64 = sphi 0, %s64
      %s66 = sphi 0, %s64
      %s67 = sphi 0, %s66
      %s81 = sphi 0, %s67
      %s85 = sphi 0, %s85
      %s87 = sphi 0, %s85
      %s88 = sphi 0, %s87
      %s102 = sphi 0, %s88
      %s108 = sphi 0, %s110
      %s111 = sphi 0, %s108
      %s112 = sphi 0, %s111
      %s128 = sphi 0, %s112
      %s134 = sphi 0, %s136
      %s137 = sphi 0, %s134
      %s138 = sphi 0, %s137
      %s154 = sphi 0, %s138
      %s162 = sphi 0, %s164
      %s165 = sphi 0, %s162
      %s166 = sphi 0, %s165
      %s182 = sphi 0, %s166
    $region4: #{tpu_custom_call.1} parent=1 // loop_header_branch
      %21 = sbr.rel (%p19) target = $region8
    $region5: #{tpu_custom_call.1} parent=1 // loop_body
      %s23 = ssub.s32 %s18, 1
      %s24 = ssub.s32 %s18, 2
      %s31 = sadd.s32 1, %s26
      %p32 = scmp.ge.s32.totalorder %s31, 1
      %s33 = scalar_select %p32, 0, %s31
      %s34 = sadd.s32 1, %s25
      %s35 = scalar_select %p32, %s34, %s25
      %p36 = scmp.ge.s32.totalorder %s35, 2
      %s37 = scalar_select %p36, 0, %s35
      %s38 = ssub.s32 %s25, %s37
      %p39 = scmp.eq.s32.totalorder %s38, 0
      %s41 = sadd.s32 %s40, 1
      %s42 = scalar_select %p39, %s40, %s41
      %p45 = pneg %p39
      %p46 = scmp.eq.s32.totalorder %s18, 1
      %p47 = por %p45, %p46
      %p48 = scmp.ne.s32.totalorder %s40, %s43
      %p49 = scmp.eq.s32.totalorder %s18, 0
      %p50 = por %p48, %p49
      %p51 = scmp.ne.s32.totalorder %s40, %s43
      %p52 = scmp.eq.s32.totalorder %s23, 1
      %p53 = por %p51, %p52
      %p54 = scmp.ne.s32.totalorder %s43, %s44
      %p55 = scmp.eq.s32.totalorder %s23, 0
      %p56 = por %p54, %p55
      %p57 = scmp.ne.s32.totalorder %s43, %s44
      %p58 = scmp.eq.s32.totalorder %s24, 1
      %p59 = por %p57, %p58
      %p61 = scmp.ne.s32.totalorder %s44, %s60
      %p62 = scmp.eq.s32.totalorder %s24, 0
      %p63 = por %p61, %p62
      %s65 = sadd.s32 %s64, 1
      %p68 = scmp.eq.s32.totalorder %s18, 1
      %p69 = scmp.ne.s32.totalorder %s64, %s66
      %p70 = scmp.eq.s32.totalorder %s18, 0
      %p71 = por %p69, %p70
      %p72 = scmp.ne.s32.totalorder %s64, %s66
      %p73 = scmp.eq.s32.totalorder %s23, 1
      %p74 = por %p72, %p73
      %p75 = scmp.ne.s32.totalorder %s66, %s67
      %p76 = scmp.eq.s32.totalorder %s23, 0
      %p77 = por %p75, %p76
      %p78 = scmp.ne.s32.totalorder %s66, %s67
      %p79 = scmp.eq.s32.totalorder %s24, 1
      %p80 = por %p78, %p79
      %p82 = scmp.ne.s32.totalorder %s67, %s81
      %p83 = scmp.eq.s32.totalorder %s24, 0
      %p84 = por %p82, %p83
      %s86 = sadd.s32 %s85, 1
      %p89 = scmp.eq.s32.totalorder %s18, 1
      %p90 = scmp.ne.s32.totalorder %s85, %s87
      %p91 = scmp.eq.s32.totalorder %s18, 0
      %p92 = por %p90, %p91
      %p93 = scmp.ne.s32.totalorder %s85, %s87
      %p94 = scmp.eq.s32.totalorder %s23, 1
      %p95 = por %p93, %p94
      %p96 = scmp.ne.s32.totalorder %s87, %s88
      %p97 = scmp.eq.s32.totalorder %s23, 0
      %p98 = por %p96, %p97
      %p99 = scmp.ne.s32.totalorder %s87, %s88
      %p100 = scmp.eq.s32.totalorder %s24, 1
      %p101 = por %p99, %p100
      %p103 = scmp.ne.s32.totalorder %s88, %s102
      %p104 = scmp.eq.s32.totalorder %s24, 0
      %p105 = por %p103, %p104
      %s106 = ssub.s32 %s26, %s33
      %p107 = scmp.eq.s32.totalorder %s106, 0
      %s109 = sadd.s32 %s108, 1
      %s110 = scalar_select %p107, %s108, %s109
      %p113 = pneg %p107
      %p114 = scmp.eq.s32.totalorder %s18, 1
      %p115 = por %p113, %p114
      %p116 = scmp.ne.s32.totalorder %s108, %s111
      %p117 = scmp.eq.s32.totalorder %s18, 0
      %p118 = por %p116, %p117
      %p119 = scmp.ne.s32.totalorder %s108, %s111
      %p120 = scmp.eq.s32.totalorder %s23, 1
      %p121 = por %p119, %p120
      %p122 = scmp.ne.s32.totalorder %s111, %s112
      %p123 = scmp.eq.s32.totalorder %s23, 0
      %p124 = por %p122, %p123
      %p125 = scmp.ne.s32.totalorder %s111, %s112
      %p126 = scmp.eq.s32.totalorder %s24, 1
      %p127 = por %p125, %p126
      %p129 = scmp.ne.s32.totalorder %s112, %s128
      %p130 = scmp.eq.s32.totalorder %s24, 0
      %p131 = por %p129, %p130
      %s132 = ssub.s32 %s26, %s33
      %p133 = scmp.eq.s32.totalorder %s132, 0
      %s135 = sadd.s32 %s134, 1
      %s136 = scalar_select %p133, %s134, %s135
      %p139 = pneg %p133
      %p140 = scmp.eq.s32.totalorder %s18, 1
      %p141 = por %p139, %p140
      %p142 = scmp.ne.s32.totalorder %s134, %s137
      %p143 = scmp.eq.s32.totalorder %s18, 0
      %p144 = por %p142, %p143
      %p145 = scmp.ne.s32.totalorder %s134, %s137
      %p146 = scmp.eq.s32.totalorder %s23, 1
      %p147 = por %p145, %p146
      %p148 = scmp.ne.s32.totalorder %s137, %s138
      %p149 = scmp.eq.s32.totalorder %s23, 0
      %p150 = por %p148, %p149
      %p151 = scmp.ne.s32.totalorder %s137, %s138
      %p152 = scmp.eq.s32.totalorder %s24, 1
      %p153 = por %p151, %p152
      %p155 = scmp.ne.s32.totalorder %s138, %s154
      %p156 = scmp.eq.s32.totalorder %s24, 0
      %p157 = por %p155, %p156
      %s158 = ssub.s32 %s25, %s37
      %s159 = ssub.s32 %s26, %s33
      %s160 = sor.u32 %s158, %s159
      %p161 = scmp.eq.s32.totalorder %s160, 0
      %s163 = sadd.s32 %s162, 1
      %s164 = scalar_select %p161, %s162, %s163
      %p167 = pneg %p161
      %p168 = scmp.eq.s32.totalorder %s18, 1
      %p169 = por %p167, %p168
      %p170 = scmp.ne.s32.totalorder %s162, %s165
      %p171 = scmp.eq.s32.totalorder %s18, 0
      %p172 = por %p170, %p171
      %p173 = scmp.ne.s32.totalorder %s162, %s165
      %p174 = scmp.eq.s32.totalorder %s23, 1
      %p175 = por %p173, %p174
      %p176 = scmp.ne.s32.totalorder %s165, %s166
      %p177 = scmp.eq.s32.totalorder %s23, 0
      %p178 = por %p176, %p177
      %p179 = scmp.ne.s32.totalorder %s165, %s166
      %p180 = scmp.eq.s32.totalorder %s24, 1
      %p181 = por %p179, %p180
      %p183 = scmp.ne.s32.totalorder %s166, %s182
      %p184 = scmp.eq.s32.totalorder %s24, 0
      %p185 = por %p183, %p184
      %p186 = scmp.le.s32.totalorder 1, %s18
      %p187 = scmp.lt.s32.totalorder %s18, 3
      %p188 = pnand %p186, %p187
      %p189 = pneg %p188
      // Predicated region
      $region9: #{tpu_custom_call.1} parent=5 // pred_check
        _
      $region10: #{tpu_custom_call.1} parent=5 // pred_check_branch
        %191 = sbr.rel (%p188) target = $region12
      $region11: #{tpu_custom_call.1} parent=5 // pred_region
        %s192 = ssub.s32 %s18, 1
        // Predicated region
        $region13: #{tpu_custom_call.1} parent=11 // pred_check
          %p193 = pneg %p77
        $region14: #{tpu_custom_call.1} parent=11 // pred_check_branch
          %195 = sbr.rel (%p193) target = $region16
        $region15: #{tpu_custom_call.1} parent=11 // pred_region
          %197 = vsyncadd [#allocation7], 0
          %s198 = sshll.u32 %s1, 4
          %s199 = int_to_ptr.hbm [resolvable:$true] %s198
          %s200 = sshll.u32 [#allocation6], 4
          %s201 = int_to_ptr.vmem [resolvable:$true] %s200
          %206 = dma.hbm_to_vmem [thread:$0]  %s199, 3072, %s201, [#allocation7], 64, 64, 4
        $region16: #{tpu_custom_call.1} parent=11 // pred_fallthru
          _
        // Predicated region
        $region17: #{tpu_custom_call.1} parent=11 // pred_check
          %p207 = pneg %p98
        $region18: #{tpu_custom_call.1} parent=11 // pred_check_branch
          %209 = sbr.rel (%p207) target = $region20
        $region19: #{tpu_custom_call.1} parent=11 // pred_region
          _
        $region20: #{tpu_custom_call.1} parent=11 // pred_fallthru
          _
        // Predicated region
        $region21: #{tpu_custom_call.1} parent=11 // pred_check
          %p210 = pneg %p124
        $region22: #{tpu_custom_call.1} parent=11 // pred_check_branch
          %212 = sbr.rel (%p210) target = $region24
        $region23: #{tpu_custom_call.1} parent=11 // pred_region
          %214 = vsyncadd [#allocation7], 0
          %s215 = smul.addr %s28, 4
          %s216 = scalar_lea.hbm %s3, %s215
          %s217 = sshll.u32 %s216, 4
          %s218 = int_to_ptr.hbm [resolvable:$true] %s217
          %s219 = sshll.u32 [#allocation8], 4
          %s220 = int_to_ptr.vmem [resolvable:$true] %s219
          %225 = dma.hbm_to_vmem [thread:$0]  %s218, 1024, %s220, [#allocation7], 64, 64, 4
        $region24: #{tpu_custom_call.1} parent=11 // pred_fallthru
          _
        // Predicated region
        $region25: #{tpu_custom_call.1} parent=11 // pred_check
          %p226 = pneg %p150
        $region26: #{tpu_custom_call.1} parent=11 // pred_check_branch
          %228 = sbr.rel (%p226) target = $region28
        $region27: #{tpu_custom_call.1} parent=11 // pred_region
          %p229 = scmp.lt.s32.totalorder %s28, 0
          %s230 = scalar_select %p229, %s28, 0
          %s231 = scalar_lea.vmem %s4, %s230
        $region28: #{tpu_custom_call.1} parent=11 // pred_fallthru
          _
      $region12: #{tpu_custom_call.1} parent=5 // pred_fallthru
        _
      %p232 = scmp.lt.s32.totalorder %s18, 2
      // Predicated region
      $region29: #{tpu_custom_call.1} parent=5 // pred_check
        %p233 = pneg %p232
      $region30: #{tpu_custom_call.1} parent=5 // pred_check_branch
        %235 = sbr.rel (%p233) target = $region32
      $region31: #{tpu_custom_call.1} parent=5 // pred_region
        // Predicated region
        $region33: #{tpu_custom_call.1} parent=31 // pred_check
          %p236 = pneg %p50
        $region34: #{tpu_custom_call.1} parent=31 // pred_check_branch
          %238 = sbr.rel (%p236) target = $region36
        $region35: #{tpu_custom_call.1} parent=31 // pred_region
          %s239 = sand.u32 %s40, 1
          %s240 = scalar_lea.sflag [#allocation4], %s239
          %s241 = sand.u32 %s40, 1
          %s242 = smul.addr %s241, 384
          %s243 = scalar_lea.vmem [#allocation3], %s242
          %s244 = smul.u32 16, %s25
          %246 = vsyncadd %s240, 0
          %s247 = smul.addr %s244, 3
          %s248 = smul.addr %s247, 8
          %s249 = scalar_lea.hbm %s0, %s248
          %s250 = sshll.u32 %s249, 4
          %s251 = int_to_ptr.hbm [resolvable:$true] %s250
          %s252 = sshll.u32 %s243, 4
          %s253 = int_to_ptr.vmem [resolvable:$true] %s252
          %258 = dma.hbm_to_vmem [thread:$0]  %s251, 6144, %s253, %s240, 384, 384, 24
        $region36: #{tpu_custom_call.1} parent=31 // pred_fallthru
          _
      $region32: #{tpu_custom_call.1} parent=5 // pred_fallthru
        _
      %p259 = scmp.le.s32.totalorder 1, %s18
      %p260 = scmp.lt.s32.totalorder %s18, 3
      %p261 = pnand %p259, %p260
      %p262 = pneg %p261
      // Predicated region
      $region37: #{tpu_custom_call.1} parent=5 // pred_check
        _
      $region38: #{tpu_custom_call.1} parent=5 // pred_check_branch
        %264 = sbr.rel (%p261) target = $region40
      $region39: #{tpu_custom_call.1} parent=5 // pred_region
        %s265 = ssub.s32 %s18, 1
        %s266 = sand.u32 %s43, 1
        %s267 = scalar_lea.sflag [#allocation4], %s266
        %s268 = sand.u32 %s43, 1
        %s269 = smul.addr %s268, 384
        %s270 = scalar_lea.vmem [#allocation3], %s269
        // Predicated region
        $region41: #{tpu_custom_call.1} parent=39 // pred_check
          %p271 = pneg %p56
        $region42: #{tpu_custom_call.1} parent=39 // pred_check_branch
          %273 = sbr.rel (%p271) target = $region44
        $region43: #{tpu_custom_call.1} parent=39 // pred_region
          %275 = dma.done %s267, 6144
        $region44: #{tpu_custom_call.1} parent=39 // pred_fallthru
          _
        // Predicated region
        $region45: #{tpu_custom_call.1} parent=39 // pred_check
          %p276 = pneg %p77
        $region46: #{tpu_custom_call.1} parent=39 // pred_check_branch
          %278 = sbr.rel (%p276) target = $region48
        $region47: #{tpu_custom_call.1} parent=39 // pred_region
          %280 = dma.done [#allocation7], 3072
        $region48: #{tpu_custom_call.1} parent=39 // pred_fallthru
          _
        // Predicated region
        $region49: #{tpu_custom_call.1} parent=39 // pred_check
          %p281 = pneg %p124
        $region50: #{tpu_custom_call.1} parent=39 // pred_check_branch
          %283 = sbr.rel (%p281) target = $region52
        $region51: #{tpu_custom_call.1} parent=39 // pred_region
          %285 = dma.done [#allocation7], 1024
        $region52: #{tpu_custom_call.1} parent=39 // pred_fallthru
          _
        %s286 = sand.u32 %s43, 1
        %s287 = scalar_lea.sflag [#allocation4], %s286
        %s288 = sand.u32 %s43, 1
        %s289 = smul.addr %s288, 384
        %s290 = scalar_lea.vmem [#allocation3], %s289
        %p291 = pneg %p56
        %p292 = pneg %p53
        %p293 = pneg %p77
        %p294 = pneg %p74
        %p295 = pneg %p98
        %p296 = pneg %p95
        %p297 = pneg %p124
        %p298 = pneg %p121
        %p299 = scmp.lt.s32.totalorder %s28, 0
        %s300 = scalar_select %p299, %s28, 0
        %s301 = scalar_lea.vmem %s4, %s300
        %p302 = pneg %p150
        %p303 = pneg %p147
        %p304 = pneg %p178
        %p305 = pneg %p175
        %s306 = sand.u32 %s165, 1
        %s307 = scalar_lea.sflag [#allocation5], %s306
        %s308 = sand.u32 %s165, 1
        %s309 = smul.addr %s308, 128
        %s310 = scalar_lea.vmem [#allocation9], %s309
        %s311 = smul.u32 16, %s27
        %p312 = scmp.lt.s32.totalorder %s28, 0
        %s313 = scalar_select %p312, %s28, 0
        %s314 = scalar_lea.vmem %s4, %s313
        %s315 = smul.u32 16, %s27
        %p316 = scmp.eq.s32.totalorder %s28, 0
        // Predicated region
        $region53: #{tpu_custom_call.1} parent=39 // pred_check
          %p317 = pneg %p316
        $region54: #{tpu_custom_call.1} parent=39 // pred_check_branch
          %319 = sbr.rel (%p317) target = $region56
        $region55: #{tpu_custom_call.1} parent=39 // pred_region
          %v320 = vld [vmem:[%s270] sm:$0xff]
          %v321 = vld [vmem:[%s270 + $0x8] sm:$0xff]
          %v322 = vld [vmem:[%s270 + $0x10] sm:$0xff]
          %v323 = vld [vmem:[%s270 + $0x18] sm:$0xff]
          %v324 = vld [vmem:[%s270 + $0x20] sm:$0xff]
          %v325 = vld [vmem:[%s270 + $0x28] sm:$0xff]
          %v326 = vld [vmem:[%s270 + $0x30] sm:$0xff]
          %v327 = vld [vmem:[%s270 + $0x38] sm:$0xff]
          %v328 = vld [vmem:[%s270 + $0x40] sm:$0xff]
          %v329 = vld [vmem:[%s270 + $0x48] sm:$0xff]
          %v330 = vld [vmem:[%s270 + $0x50] sm:$0xff]
          %v331 = vld [vmem:[%s270 + $0x58] sm:$0xff]
          %v332 = vld [vmem:[%s270 + $0x60] sm:$0xff]
          %v333 = vld [vmem:[%s270 + $0x68] sm:$0xff]
          %v334 = vld [vmem:[%s270 + $0x70] sm:$0xff]
          %v335 = vld [vmem:[%s270 + $0x78] sm:$0xff]
          %v336 = vld [vmem:[%s270 + $0x80] sm:$0xff]
          %v337 = vld [vmem:[%s270 + $0x88] sm:$0xff]
          %v338 = vld [vmem:[%s270 + $0x90] sm:$0xff]
          %v339 = vld [vmem:[%s270 + $0x98] sm:$0xff]
          %v340 = vld [vmem:[%s270 + $0xa0] sm:$0xff]
          %v341 = vld [vmem:[%s270 + $0xa8] sm:$0xff]
          %v342 = vld [vmem:[%s270 + $0xb0] sm:$0xff]
          %v343 = vld [vmem:[%s270 + $0xb8] sm:$0xff]
          %v344 = vld [vmem:[%s270 + $0xc0] sm:$0xff]
          %v345 = vld [vmem:[%s270 + $0xc8] sm:$0xff]
          %v346 = vld [vmem:[%s270 + $0xd0] sm:$0xff]
          %v347 = vld [vmem:[%s270 + $0xd8] sm:$0xff]
          %v348 = vld [vmem:[%s270 + $0xe0] sm:$0xff]
          %v349 = vld [vmem:[%s270 + $0xe8] sm:$0xff]
          %v350 = vld [vmem:[%s270 + $0xf0] sm:$0xff]
          %v351 = vld [vmem:[%s270 + $0xf8] sm:$0xff]
          %v352 = vld [vmem:[%s270 + $0x100] sm:$0xff]
          %v353 = vld [vmem:[%s270 + $0x108] sm:$0xff]
          %v354 = vld [vmem:[%s270 + $0x110] sm:$0xff]
          %v355 = vld [vmem:[%s270 + $0x118] sm:$0xff]
          %v356 = vld [vmem:[%s270 + $0x120] sm:$0xff]
          %v357 = vld [vmem:[%s270 + $0x128] sm:$0xff]
          %v358 = vld [vmem:[%s270 + $0x130] sm:$0xff]
          %v359 = vld [vmem:[%s270 + $0x138] sm:$0xff]
          %v360 = vld [vmem:[%s270 + $0x140] sm:$0xff]
          %v361 = vld [vmem:[%s270 + $0x148] sm:$0xff]
          %v362 = vld [vmem:[%s270 + $0x150] sm:$0xff]
          %v363 = vld [vmem:[%s270 + $0x158] sm:$0xff]
          %v364 = vld [vmem:[%s270 + $0x160] sm:$0xff]
          %v365 = vld [vmem:[%s270 + $0x168] sm:$0xff]
          %v366 = vld [vmem:[%s270 + $0x170] sm:$0xff]
          %v367 = vld [vmem:[%s270 + $0x178] sm:$0xff]
          %v368 = vpack.c.bf16 %v323, %v320
          %v369 = vpack.c.bf16 %v324, %v321
          %v370 = vpack.c.bf16 %v325, %v322
          %v371 = vpack.c.bf16 %v329, %v326
          %v372 = vpack.c.bf16 %v330, %v327
          %v373 = vpack.c.bf16 %v331, %v328
          %v374 = vpack.c.bf16 %v335, %v332
          %v375 = vpack.c.bf16 %v336, %v333
          %v376 = vpack.c.bf16 %v337, %v334
          %v377 = vpack.c.bf16 %v341, %v338
          %v378 = vpack.c.bf16 %v342, %v339
          %v379 = vpack.c.bf16 %v343, %v340
          %v380 = vpack.c.bf16 %v347, %v344
          %v381 = vpack.c.bf16 %v348, %v345
          %v382 = vpack.c.bf16 %v349, %v346
          %v383 = vpack.c.bf16 %v353, %v350
          %v384 = vpack.c.bf16 %v354, %v351
          %v385 = vpack.c.bf16 %v355, %v352
          %v386 = vpack.c.bf16 %v359, %v356
          %v387 = vpack.c.bf16 %v360, %v357
          %v388 = vpack.c.bf16 %v361, %v358
          %v389 = vpack.c.bf16 %v365, %v362
          %v390 = vpack.c.bf16 %v366, %v363
          %v391 = vpack.c.bf16 %v367, %v364
          %v392 = vld [vmem:[#allocation6] sm:$0xf]
          %v393 = vld [vmem:[#allocation6 + $0x4] sm:$0xf]
          %v394 = vld [vmem:[#allocation6 + $0x8] sm:$0xf]
          %v395 = vld [vmem:[#allocation6 + $0xc] sm:$0xf]
          %v396 = vld [vmem:[#allocation6 + $0x10] sm:$0xf]
          %v397 = vld [vmem:[#allocation6 + $0x14] sm:$0xf]
          %v398 = vld [vmem:[#allocation6 + $0x18] sm:$0xf]
          %v399 = vld [vmem:[#allocation6 + $0x1c] sm:$0xf]
          %v400 = vld [vmem:[#allocation6 + $0x20] sm:$0xf]
          %v401 = vld [vmem:[#allocation6 + $0x24] sm:$0xf]
          %v402 = vld [vmem:[#allocation6 + $0x28] sm:$0xf]
          %v403 = vld [vmem:[#allocation6 + $0x2c] sm:$0xf]
          %v404 = vld [vmem:[#allocation6 + $0x30] sm:$0xf]
          %v405 = vld [vmem:[#allocation6 + $0x34] sm:$0xf]
          %v406 = vld [vmem:[#allocation6 + $0x38] sm:$0xf]
          %v407 = vld [vmem:[#allocation6 + $0x3c] sm:$0xf]
          %v408 = vld [vmem:[#allocation6 + $0x40] sm:$0xf]
          %v409 = vld [vmem:[#allocation6 + $0x44] sm:$0xf]
          %v410 = vld [vmem:[#allocation6 + $0x48] sm:$0xf]
          %v411 = vld [vmem:[#allocation6 + $0x4c] sm:$0xf]
          %v412 = vld [vmem:[#allocation6 + $0x50] sm:$0xf]
          %v413 = vld [vmem:[#allocation6 + $0x54] sm:$0xf]
          %v414 = vld [vmem:[#allocation6 + $0x58] sm:$0xf]
          %v415 = vld [vmem:[#allocation6 + $0x5c] sm:$0xf]
          %v416 = vld [vmem:[#allocation6 + $0x60] sm:$0xf]
          %v417 = vld [vmem:[#allocation6 + $0x64] sm:$0xf]
          %v418 = vld [vmem:[#allocation6 + $0x68] sm:$0xf]
          %v419 = vld [vmem:[#allocation6 + $0x6c] sm:$0xf]
          %v420 = vld [vmem:[#allocation6 + $0x70] sm:$0xf]
          %v421 = vld [vmem:[#allocation6 + $0x74] sm:$0xf]
          %v422 = vld [vmem:[#allocation6 + $0x78] sm:$0xf]
          %v423 = vld [vmem:[#allocation6 + $0x7c] sm:$0xf]
          %v424 = vld [vmem:[#allocation6 + $0x80] sm:$0xf]
          %v425 = vld [vmem:[#allocation6 + $0x84] sm:$0xf]
          %v426 = vld [vmem:[#allocation6 + $0x88] sm:$0xf]
          %v427 = vld [vmem:[#allocation6 + $0x8c] sm:$0xf]
          %v428 = vld [vmem:[#allocation6 + $0x90] sm:$0xf]
          %v429 = vld [vmem:[#allocation6 + $0x94] sm:$0xf]
          %v430 = vld [vmem:[#allocation6 + $0x98] sm:$0xf]
          %v431 = vld [vmem:[#allocation6 + $0x9c] sm:$0xf]
          %v432 = vld [vmem:[#allocation6 + $0xa0] sm:$0xf]
          %v433 = vld [vmem:[#allocation6 + $0xa4] sm:$0xf]
          %v434 = vld [vmem:[#allocation6 + $0xa8] sm:$0xf]
          %v435 = vld [vmem:[#allocation6 + $0xac] sm:$0xf]
          %v436 = vld [vmem:[#allocation6 + $0xb0] sm:$0xf]
          %v437 = vld [vmem:[#allocation6 + $0xb4] sm:$0xf]
          %v438 = vld [vmem:[#allocation6 + $0xb8] sm:$0xf]
          %v439 = vld [vmem:[#allocation6 + $0xbc] sm:$0xf]
          %v440 = vld [vmem:[%s2] sm:$0x1]
          %v442 = vperm.slane %v440, 0
          %v492 = vunpack.c.l.b16 %v392
          %v493 = vunpack.c.l.b16 %v393
          %v494 = vunpack.c.l.b16 %v394
          %v495 = vunpack.c.l.b16 %v395
          %v496 = vunpack.c.l.b16 %v396
          %v497 = vunpack.c.l.b16 %v397
          %v498 = vunpack.c.l.b16 %v398
          %v499 = vunpack.c.l.b16 %v399
          %v500 = vunpack.c.l.b16 %v400
          %v501 = vunpack.c.l.b16 %v401
          %v502 = vunpack.c.l.b16 %v402
          %v503 = vunpack.c.l.b16 %v403
          %v504 = vunpack.c.l.b16 %v404
          %v505 = vunpack.c.l.b16 %v405
          %v506 = vunpack.c.l.b16 %v406
          %v507 = vunpack.c.l.b16 %v407
          %v508 = vunpack.c.l.b16 %v408
          %v509 = vunpack.c.l.b16 %v409
          %v510 = vunpack.c.l.b16 %v410
          %v511 = vunpack.c.l.b16 %v411
          %v512 = vunpack.c.l.b16 %v412
          %v513 = vunpack.c.l.b16 %v413
          %v514 = vunpack.c.l.b16 %v414
          %v515 = vunpack.c.l.b16 %v415
          %v516 = vunpack.c.l.b16 %v416
          %v517 = vunpack.c.l.b16 %v417
          %v518 = vunpack.c.l.b16 %v418
          %v519 = vunpack.c.l.b16 %v419
          %v520 = vunpack.c.l.b16 %v420
          %v521 = vunpack.c.l.b16 %v421
          %v522 = vunpack.c.l.b16 %v422
          %v523 = vunpack.c.l.b16 %v423
          %v524 = vunpack.c.l.b16 %v424
          %v525 = vunpack.c.l.b16 %v425
          %v526 = vunpack.c.l.b16 %v426
          %v527 = vunpack.c.l.b16 %v427
          %v528 = vunpack.c.l.b16 %v428
          %v529 = vunpack.c.l.b16 %v429
          %v530 = vunpack.c.l.b16 %v430
          %v531 = vunpack.c.l.b16 %v431
          %v532 = vunpack.c.l.b16 %v432
          %v533 = vunpack.c.l.b16 %v433
          %v534 = vunpack.c.l.b16 %v434
          %v535 = vunpack.c.l.b16 %v435
          %v536 = vunpack.c.l.b16 %v436
          %v537 = vunpack.c.l.b16 %v437
          %v538 = vunpack.c.l.b16 %v438
          %v539 = vunpack.c.l.b16 %v439
          %v540 = vpack.c.b16 %v493, %v492
          %v541 = vpack.c.b16 %v495, %v494
          %v542 = vpack.c.b16 %v497, %v496
          %v543 = vpack.c.b16 %v499, %v498
          %v544 = vpack.c.b16 %v501, %v500
          %v545 = vpack.c.b16 %v503, %v502
          %v546 = vpack.c.b16 %v505, %v504
          %v547 = vpack.c.b16 %v507, %v506
          %v548 = vpack.c.b16 %v509, %v508
          %v549 = vpack.c.b16 %v511, %v510
          %v550 = vpack.c.b16 %v513, %v512
          %v551 = vpack.c.b16 %v515, %v514
          %v552 = vpack.c.b16 %v517, %v516
          %v553 = vpack.c.b16 %v519, %v518
          %v554 = vpack.c.b16 %v521, %v520
          %v555 = vpack.c.b16 %v523, %v522
          %v556 = vpack.c.b16 %v525, %v524
          %v557 = vpack.c.b16 %v527, %v526
          %v558 = vpack.c.b16 %v529, %v528
          %v559 = vpack.c.b16 %v531, %v530
          %v560 = vpack.c.b16 %v533, %v532
          %v561 = vpack.c.b16 %v535, %v534
          %v562 = vpack.c.b16 %v537, %v536
          %v563 = vpack.c.b16 %v539, %v538
          %588 = vmatpush.bf16.msra.mxu0 %v547
          %589 = vmatpush.bf16.msra.mxu0 %v546
          %590 = vmatpush.bf16.msra.mxu0 %v545
          %591 = vmatpush.bf16.msra.mxu0 %v544
          %592 = vmatpush.bf16.msra.mxu0 %v543
          %593 = vmatpush.bf16.msra.mxu0 %v542
          %594 = vmatpush.bf16.msra.mxu0 %v541
          %595 = vmatpush.bf16.msra.mxu0 %v540
          %596 = vmatmul.bf16.gmra.mxu0 %v368
          %v597 = vpop.f32.mrf.mxu0
          %v598 = vadd.f32 %v442, %v597
          %v599 = vpop.f32.mrf.mxu0
          %v600 = vadd.f32 %v442, %v599
          %601 = vmatmul.bf16.gmra.mxu0 %v371
          %v602 = vpop.f32.mrf.mxu0
          %v603 = vadd.f32 %v442, %v602
          %v604 = vpop.f32.mrf.mxu0
          %v605 = vadd.f32 %v442, %v604
          %606 = vmatmul.bf16.gmra.mxu0 %v374
          %v607 = vpop.f32.mrf.mxu0
          %v608 = vadd.f32 %v442, %v607
          %v609 = vpop.f32.mrf.mxu0
          %v610 = vadd.f32 %v442, %v609
          %611 = vmatmul.bf16.gmra.mxu0 %v377
          %v612 = vpop.f32.mrf.mxu0
          %v613 = vadd.f32 %v442, %v612
          %v614 = vpop.f32.mrf.mxu0
          %v615 = vadd.f32 %v442, %v614
          %616 = vmatmul.bf16.gmra.mxu0 %v380
          %v617 = vpop.f32.mrf.mxu0
          %v618 = vadd.f32 %v442, %v617
          %v619 = vpop.f32.mrf.mxu0
          %v620 = vadd.f32 %v442, %v619
          %621 = vmatmul.bf16.gmra.mxu0 %v383
          %v622 = vpop.f32.mrf.mxu0
          %v623 = vadd.f32 %v442, %v622
          %v624 = vpop.f32.mrf.mxu0
          %v625 = vadd.f32 %v442, %v624
          %626 = vmatmul.bf16.gmra.mxu0 %v386
          %v627 = vpop.f32.mrf.mxu0
          %v628 = vadd.f32 %v442, %v627
          %v629 = vpop.f32.mrf.mxu0
          %v630 = vadd.f32 %v442, %v629
          %631 = vmatmul.bf16.gmra.mxu0 %v389
          %v632 = vpop.f32.mrf.mxu0
          %v633 = vadd.f32 %v442, %v632
          %v634 = vpop.f32.mrf.mxu0
          %v635 = vadd.f32 %v442, %v634
          %636 = vdwg.mxu0
          %637 = vmatpush.bf16.msra.mxu0 %v555
          %638 = vmatpush.bf16.msra.mxu0 %v554
          %639 = vmatpush.bf16.msra.mxu0 %v553
          %640 = vmatpush.bf16.msra.mxu0 %v552
          %641 = vmatpush.bf16.msra.mxu0 %v551
          %642 = vmatpush.bf16.msra.mxu0 %v550
          %643 = vmatpush.bf16.msra.mxu0 %v549
          %644 = vmatpush.bf16.msra.mxu0 %v548
          %645 = vmatmul.bf16.gmra.mxu0 %v369
          %v646 = vpop.f32.mrf.mxu0
          %v647 = vadd.f32 %v598, %v646
          %v648 = vpop.f32.mrf.mxu0
          %v649 = vadd.f32 %v600, %v648
          %650 = vmatmul.bf16.gmra.mxu0 %v372
          %v651 = vpop.f32.mrf.mxu0
          %v652 = vadd.f32 %v603, %v651
          %v653 = vpop.f32.mrf.mxu0
          %v654 = vadd.f32 %v605, %v653
          %655 = vmatmul.bf16.gmra.mxu0 %v375
          %v656 = vpop.f32.mrf.mxu0
          %v657 = vadd.f32 %v608, %v656
          %v658 = vpop.f32.mrf.mxu0
          %v659 = vadd.f32 %v610, %v658
          %660 = vmatmul.bf16.gmra.mxu0 %v378
          %v661 = vpop.f32.mrf.mxu0
          %v662 = vadd.f32 %v613, %v661
          %v663 = vpop.f32.mrf.mxu0
          %v664 = vadd.f32 %v615, %v663
          %665 = vmatmul.bf16.gmra.mxu0 %v381
          %v666 = vpop.f32.mrf.mxu0
          %v667 = vadd.f32 %v618, %v666
          %v668 = vpop.f32.mrf.mxu0
          %v669 = vadd.f32 %v620, %v668
          %670 = vmatmul.bf16.gmra.mxu0 %v384
          %v671 = vpop.f32.mrf.mxu0
          %v672 = vadd.f32 %v623, %v671
          %v673 = vpop.f32.mrf.mxu0
          %v674 = vadd.f32 %v625, %v673
          %675 = vmatmul.bf16.gmra.mxu0 %v387
          %v676 = vpop.f32.mrf.mxu0
          %v677 = vadd.f32 %v628, %v676
          %v678 = vpop.f32.mrf.mxu0
          %v679 = vadd.f32 %v630, %v678
          %680 = vmatmul.bf16.gmra.mxu0 %v390
          %v681 = vpop.f32.mrf.mxu0
          %v682 = vadd.f32 %v633, %v681
          %v683 = vpop.f32.mrf.mxu0
          %v684 = vadd.f32 %v635, %v683
          %685 = vdwg.mxu0
          %686 = vmatpush.bf16.msra.mxu0 %v563
          %687 = vmatpush.bf16.msra.mxu0 %v562
          %688 = vmatpush.bf16.msra.mxu0 %v561
          %689 = vmatpush.bf16.msra.mxu0 %v560
          %690 = vmatpush.bf16.msra.mxu0 %v559
          %691 = vmatpush.bf16.msra.mxu0 %v558
          %692 = vmatpush.bf16.msra.mxu0 %v557
          %693 = vmatpush.bf16.msra.mxu0 %v556
          %694 = vmatmul.bf16.gmra.mxu0 %v370
          %v695 = vpop.f32.mrf.mxu0
          %v696 = vadd.f32 %v647, %v695
          %v697 = vpop.f32.mrf.mxu0
          %v698 = vadd.f32 %v649, %v697
          %699 = vmatmul.bf16.gmra.mxu0 %v373
          %v700 = vpop.f32.mrf.mxu0
          %v701 = vadd.f32 %v652, %v700
          %v702 = vpop.f32.mrf.mxu0
          %v703 = vadd.f32 %v654, %v702
          %704 = vmatmul.bf16.gmra.mxu0 %v376
          %v705 = vpop.f32.mrf.mxu0
          %v706 = vadd.f32 %v657, %v705
          %v707 = vpop.f32.mrf.mxu0
          %v708 = vadd.f32 %v659, %v707
          %709 = vmatmul.bf16.gmra.mxu0 %v379
          %v710 = vpop.f32.mrf.mxu0
          %v711 = vadd.f32 %v662, %v710
          %v712 = vpop.f32.mrf.mxu0
          %v713 = vadd.f32 %v664, %v712
          %714 = vmatmul.bf16.gmra.mxu0 %v382
          %v715 = vpop.f32.mrf.mxu0
          %v716 = vadd.f32 %v667, %v715
          %v717 = vpop.f32.mrf.mxu0
          %v718 = vadd.f32 %v669, %v717
          %719 = vmatmul.bf16.gmra.mxu0 %v385
          %v720 = vpop.f32.mrf.mxu0
          %v721 = vadd.f32 %v672, %v720
          %v722 = vpop.f32.mrf.mxu0
          %v723 = vadd.f32 %v674, %v722
          %724 = vmatmul.bf16.gmra.mxu0 %v388
          %v725 = vpop.f32.mrf.mxu0
          %v726 = vadd.f32 %v677, %v725
          %v727 = vpop.f32.mrf.mxu0
          %v728 = vadd.f32 %v679, %v727
          %729 = vmatmul.bf16.gmra.mxu0 %v391
          %v730 = vpop.f32.mrf.mxu0
          %v731 = vadd.f32 %v682, %v730
          %v732 = vpop.f32.mrf.mxu0
          %v733 = vadd.f32 %v684, %v732
          %734 = vdwg.mxu0
          %v735 = vmax.f32 %v696, 0.0
          %v736 = vmax.f32 %v698, 0.0
          %v737 = vmax.f32 %v701, 0.0
          %v738 = vmax.f32 %v703, 0.0
          %v739 = vmax.f32 %v706, 0.0
          %v740 = vmax.f32 %v708, 0.0
          %v741 = vmax.f32 %v711, 0.0
          %v742 = vmax.f32 %v713, 0.0
          %v743 = vmax.f32 %v716, 0.0
          %v744 = vmax.f32 %v718, 0.0
          %v745 = vmax.f32 %v721, 0.0
          %v746 = vmax.f32 %v723, 0.0
          %v747 = vmax.f32 %v726, 0.0
          %v748 = vmax.f32 %v728, 0.0
          %v749 = vmax.f32 %v731, 0.0
          %v750 = vmax.f32 %v733, 0.0
          %v751 = vpack.c.bf16 %v735, %v735
          %v752 = vpack.c.bf16 %v736, %v736
          %v753 = vpack.c.bf16 %v737, %v737
          %v754 = vpack.c.bf16 %v738, %v738
          %v755 = vpack.c.bf16 %v739, %v739
          %v756 = vpack.c.bf16 %v740, %v740
          %v757 = vpack.c.bf16 %v741, %v741
          %v758 = vpack.c.bf16 %v742, %v742
          %v759 = vpack.c.bf16 %v743, %v743
          %v760 = vpack.c.bf16 %v744, %v744
          %v761 = vpack.c.bf16 %v745, %v745
          %v762 = vpack.c.bf16 %v746, %v746
          %v763 = vpack.c.bf16 %v747, %v747
          %v764 = vpack.c.bf16 %v748, %v748
          %v765 = vpack.c.bf16 %v749, %v749
          %v766 = vpack.c.bf16 %v750, %v750
          %767 = vst [vmem:[#allocation2] sm:$0xf] %v751
          %768 = vst [vmem:[#allocation2 + $0x4] sm:$0xf] %v752
          %769 = vst [vmem:[#allocation2 + $0x8] sm:$0xf] %v753
          %770 = vst [vmem:[#allocation2 + $0xc] sm:$0xf] %v754
          %771 = vst [vmem:[#allocation2 + $0x10] sm:$0xf] %v755
          %772 = vst [vmem:[#allocation2 + $0x14] sm:$0xf] %v756
          %773 = vst [vmem:[#allocation2 + $0x18] sm:$0xf] %v757
          %774 = vst [vmem:[#allocation2 + $0x1c] sm:$0xf] %v758
          %775 = vst [vmem:[#allocation2 + $0x20] sm:$0xf] %v759
          %776 = vst [vmem:[#allocation2 + $0x24] sm:$0xf] %v760
          %777 = vst [vmem:[#allocation2 + $0x28] sm:$0xf] %v761
          %778 = vst [vmem:[#allocation2 + $0x2c] sm:$0xf] %v762
          %779 = vst [vmem:[#allocation2 + $0x30] sm:$0xf] %v763
          %780 = vst [vmem:[#allocation2 + $0x34] sm:$0xf] %v764
          %781 = vst [vmem:[#allocation2 + $0x38] sm:$0xf] %v765
          %782 = vst [vmem:[#allocation2 + $0x3c] sm:$0xf] %v766
        $region56: #{tpu_custom_call.1} parent=39 // pred_fallthru
          _
        %v783 = vld [vmem:[#allocation2] sm:$0xf]
        %v784 = vld [vmem:[#allocation2 + $0x4] sm:$0xf]
        %v785 = vld [vmem:[#allocation2 + $0x8] sm:$0xf]
        %v786 = vld [vmem:[#allocation2 + $0xc] sm:$0xf]
        %v787 = vld [vmem:[#allocation2 + $0x10] sm:$0xf]
        %v788 = vld [vmem:[#allocation2 + $0x14] sm:$0xf]
        %v789 = vld [vmem:[#allocation2 + $0x18] sm:$0xf]
        %v790 = vld [vmem:[#allocation2 + $0x1c] sm:$0xf]
        %v791 = vld [vmem:[#allocation2 + $0x20] sm:$0xf]
        %v792 = vld [vmem:[#allocation2 + $0x24] sm:$0xf]
        %v793 = vld [vmem:[#allocation2 + $0x28] sm:$0xf]
        %v794 = vld [vmem:[#allocation2 + $0x2c] sm:$0xf]
        %v795 = vld [vmem:[#allocation2 + $0x30] sm:$0xf]
        %v796 = vld [vmem:[#allocation2 + $0x34] sm:$0xf]
        %v797 = vld [vmem:[#allocation2 + $0x38] sm:$0xf]
        %v798 = vld [vmem:[#allocation2 + $0x3c] sm:$0xf]
        %v799 = vld [vmem:[#allocation8] sm:$0xf]
        %v800 = vld [vmem:[#allocation8 + $0x4] sm:$0xf]
        %v801 = vld [vmem:[#allocation8 + $0x8] sm:$0xf]
        %v802 = vld [vmem:[#allocation8 + $0xc] sm:$0xf]
        %v803 = vld [vmem:[#allocation8 + $0x10] sm:$0xf]
        %v804 = vld [vmem:[#allocation8 + $0x14] sm:$0xf]
        %v805 = vld [vmem:[#allocation8 + $0x18] sm:$0xf]
        %v806 = vld [vmem:[#allocation8 + $0x1c] sm:$0xf]
        %v807 = vld [vmem:[#allocation8 + $0x20] sm:$0xf]
        %v808 = vld [vmem:[#allocation8 + $0x24] sm:$0xf]
        %v809 = vld [vmem:[#allocation8 + $0x28] sm:$0xf]
        %v810 = vld [vmem:[#allocation8 + $0x2c] sm:$0xf]
        %v811 = vld [vmem:[#allocation8 + $0x30] sm:$0xf]
        %v812 = vld [vmem:[#allocation8 + $0x34] sm:$0xf]
        %v813 = vld [vmem:[#allocation8 + $0x38] sm:$0xf]
        %v814 = vld [vmem:[#allocation8 + $0x3c] sm:$0xf]
        %v815 = vld [vmem:[%s314] sm:$0x1]
        %v817 = vperm.slane %v815, 0
        %v835 = vunpack.c.l.b16 %v783
        %v836 = vunpack.c.l.b16 %v784
        %v837 = vunpack.c.l.b16 %v785
        %v838 = vunpack.c.l.b16 %v786
        %v839 = vunpack.c.l.b16 %v787
        %v840 = vunpack.c.l.b16 %v788
        %v841 = vunpack.c.l.b16 %v789
        %v842 = vunpack.c.l.b16 %v790
        %v843 = vunpack.c.l.b16 %v791
        %v844 = vunpack.c.l.b16 %v792
        %v845 = vunpack.c.l.b16 %v793
        %v846 = vunpack.c.l.b16 %v794
        %v847 = vunpack.c.l.b16 %v795
        %v848 = vunpack.c.l.b16 %v796
        %v849 = vunpack.c.l.b16 %v797
        %v850 = vunpack.c.l.b16 %v798
        %v851 = vpack.c.b16 %v836, %v835
        %v852 = vpack.c.b16 %v838, %v837
        %v853 = vpack.c.b16 %v840, %v839
        %v854 = vpack.c.b16 %v842, %v841
        %v855 = vpack.c.b16 %v844, %v843
        %v856 = vpack.c.b16 %v846, %v845
        %v857 = vpack.c.b16 %v848, %v847
        %v858 = vpack.c.b16 %v850, %v849
        %v883 = vunpack.c.l.b16 %v799
        %v884 = vunpack.c.l.b16 %v800
        %v885 = vunpack.c.l.b16 %v801
        %v886 = vunpack.c.l.b16 %v802
        %v887 = vunpack.c.l.b16 %v803
        %v888 = vunpack.c.l.b16 %v804
        %v889 = vunpack.c.l.b16 %v805
        %v890 = vunpack.c.l.b16 %v806
        %v891 = vunpack.c.l.b16 %v807
        %v892 = vunpack.c.l.b16 %v808
        %v893 = vunpack.c.l.b16 %v809
        %v894 = vunpack.c.l.b16 %v810
        %v895 = vunpack.c.l.b16 %v811
        %v896 = vunpack.c.l.b16 %v812
        %v897 = vunpack.c.l.b16 %v813
        %v898 = vunpack.c.l.b16 %v814
        %v899 = vpack.c.b16 %v884, %v883
        %v900 = vpack.c.b16 %v886, %v885
        %v901 = vpack.c.b16 %v888, %v887
        %v902 = vpack.c.b16 %v890, %v889
        %v903 = vpack.c.b16 %v892, %v891
        %v904 = vpack.c.b16 %v894, %v893
        %v905 = vpack.c.b16 %v896, %v895
        %v906 = vpack.c.b16 %v898, %v897
        %915 = vmatpush.bf16.msra.mxu0 %v906
        %916 = vmatpush.bf16.msra.mxu0 %v905
        %917 = vmatpush.bf16.msra.mxu0 %v904
        %918 = vmatpush.bf16.msra.mxu0 %v903
        %919 = vmatpush.bf16.msra.mxu0 %v902
        %920 = vmatpush.bf16.msra.mxu0 %v901
        %921 = vmatpush.bf16.msra.mxu0 %v900
        %922 = vmatpush.bf16.msra.mxu0 %v899
        %923 = vmatmul.bf16.gmra.mxu0 %v851
        %v924 = vpop.f32.mrf.mxu0
        %v925 = vadd.f32 %v817, %v924
        %v926 = vpop.f32.mrf.mxu0
        %v927 = vadd.f32 %v817, %v926
        %928 = vmatmul.bf16.gmra.mxu0 %v852
        %v929 = vpop.f32.mrf.mxu0
        %v930 = vadd.f32 %v817, %v929
        %v931 = vpop.f32.mrf.mxu0
        %v932 = vadd.f32 %v817, %v931
        %933 = vmatmul.bf16.gmra.mxu0 %v853
        %v934 = vpop.f32.mrf.mxu0
        %v935 = vadd.f32 %v817, %v934
        %v936 = vpop.f32.mrf.mxu0
        %v937 = vadd.f32 %v817, %v936
        %938 = vmatmul.bf16.gmra.mxu0 %v854
        %v939 = vpop.f32.mrf.mxu0
        %v940 = vadd.f32 %v817, %v939
        %v941 = vpop.f32.mrf.mxu0
        %v942 = vadd.f32 %v817, %v941
        %943 = vmatmul.bf16.gmra.mxu0 %v855
        %v944 = vpop.f32.mrf.mxu0
        %v945 = vadd.f32 %v817, %v944
        %v946 = vpop.f32.mrf.mxu0
        %v947 = vadd.f32 %v817, %v946
        %948 = vmatmul.bf16.gmra.mxu0 %v856
        %v949 = vpop.f32.mrf.mxu0
        %v950 = vadd.f32 %v817, %v949
        %v951 = vpop.f32.mrf.mxu0
        %v952 = vadd.f32 %v817, %v951
        %953 = vmatmul.bf16.gmra.mxu0 %v857
        %v954 = vpop.f32.mrf.mxu0
        %v955 = vadd.f32 %v817, %v954
        %v956 = vpop.f32.mrf.mxu0
        %v957 = vadd.f32 %v817, %v956
        %958 = vmatmul.bf16.gmra.mxu0 %v858
        %v959 = vpop.f32.mrf.mxu0
        %v960 = vadd.f32 %v817, %v959
        %v961 = vpop.f32.mrf.mxu0
        %v962 = vadd.f32 %v817, %v961
        %963 = vdwg.mxu0
        %964 = vst [vmem:[%s310] sm:$0xff] %v925
        %965 = vst [vmem:[%s310 + $0x8] sm:$0xff] %v927
        %966 = vst [vmem:[%s310 + $0x10] sm:$0xff] %v930
        %967 = vst [vmem:[%s310 + $0x18] sm:$0xff] %v932
        %968 = vst [vmem:[%s310 + $0x20] sm:$0xff] %v935
        %969 = vst [vmem:[%s310 + $0x28] sm:$0xff] %v937
        %970 = vst [vmem:[%s310 + $0x30] sm:$0xff] %v940
        %971 = vst [vmem:[%s310 + $0x38] sm:$0xff] %v942
        %972 = vst [vmem:[%s310 + $0x40] sm:$0xff] %v945
        %973 = vst [vmem:[%s310 + $0x48] sm:$0xff] %v947
        %974 = vst [vmem:[%s310 + $0x50] sm:$0xff] %v950
        %975 = vst [vmem:[%s310 + $0x58] sm:$0xff] %v952
        %976 = vst [vmem:[%s310 + $0x60] sm:$0xff] %v955
        %977 = vst [vmem:[%s310 + $0x68] sm:$0xff] %v957
        %978 = vst [vmem:[%s310 + $0x70] sm:$0xff] %v960
        %979 = vst [vmem:[%s310 + $0x78] sm:$0xff] %v962
        %s980 = sand.u32 %s165, 1
        %s981 = scalar_lea.sflag [#allocation5], %s980
        %s982 = sand.u32 %s165, 1
        %s983 = smul.addr %s982, 128
        %s984 = scalar_lea.vmem [#allocation9], %s983
        // Predicated region
        $region57: #{tpu_custom_call.1} parent=39 // pred_check
          %p985 = pneg %p175
        $region58: #{tpu_custom_call.1} parent=39 // pred_check_branch
          %987 = sbr.rel (%p985) target = $region60
        $region59: #{tpu_custom_call.1} parent=39 // pred_region
          %s988 = smul.u32 16, %s27
          %990 = vsyncadd %s981, 0
          %s991 = sadd.s32 %s28, %s988
          %s992 = smul.addr %s991, 8
          %s993 = scalar_lea.hbm %s5, %s992
          %s994 = sshll.u32 %s984, 4
          %s995 = int_to_ptr.vmem [resolvable:$true] %s994
          %s996 = sshll.u32 %s993, 4
          %s997 = int_to_ptr.hbm [resolvable:$true] %s996
          %1002 = dma.vmem_to_hbm [thread:$0]  %s995, 2048, %s997, %s981, 128, 128, 8
        $region60: #{tpu_custom_call.1} parent=39 // pred_fallthru
          _
      $region40: #{tpu_custom_call.1} parent=5 // pred_fallthru
        _
      %p1003 = scmp.le.s32.totalorder 2, %s18
      // Predicated region
      $region61: #{tpu_custom_call.1} parent=5 // pred_check
        %p1004 = pneg %p1003
      $region62: #{tpu_custom_call.1} parent=5 // pred_check_branch
        %1006 = sbr.rel (%p1004) target = $region64
      $region63: #{tpu_custom_call.1} parent=5 // pred_region
        %s1007 = ssub.s32 %s18, 2
        // Predicated region
        $region65: #{tpu_custom_call.1} parent=63 // pred_check
          %p1008 = pneg %p181
        $region66: #{tpu_custom_call.1} parent=63 // pred_check_branch
          %1010 = sbr.rel (%p1008) target = $region68
        $region67: #{tpu_custom_call.1} parent=63 // pred_region
          %s1011 = sand.u32 %s166, 1
          %s1012 = scalar_lea.sflag [#allocation5], %s1011
          %s1013 = sand.u32 %s166, 1
          %s1014 = smul.addr %s1013, 128
          %s1015 = scalar_lea.vmem [#allocation9], %s1014
          %1017 = dma.done %s1012, 2048
        $region68: #{tpu_custom_call.1} parent=63 // pred_fallthru
          _
      $region64: #{tpu_custom_call.1} parent=5 // pred_fallthru
        _
    $region6: #{tpu_custom_call.1} parent=1 // loop_footer
      %s22 = sadd.s32 1, %s18
    $region7: #{tpu_custom_call.1} parent=1 // loop_footer_branch
      %17 = sbr.rel target = $region3
    $region8: #{tpu_custom_call.1} parent=1 // loop_exit
      _
    %1018 = vsyncpa [#allocation4], 1
    %s1019 = scalar_lea.sflag [#allocation4], 1
    %1020 = vsyncpa %s1019, 1
    %1021 = vsyncpa [#allocation7], 1
    %1022 = vsyncpa [#allocation5], 1
    %s1023 = scalar_lea.sflag [#allocation5], 1
    %1024 = vsyncpa %s1023, 1

// kernel: tpu_custom_call.1
$region0: #{tpu_custom_call.1}
  #allocation0 [shape = 'u32[]', space=smem, size = 0x4, offset = 0x4, fixed_abs, tag = 'smem constant byte address 0x4 - core index']
  #allocation1 [shape = 'u32[72,128]{1,0:T(1,128)}', space=vmem, size = 0x9000, scoped, tag = 'internal scratch']
  #allocation2 [shape = 'bf16[128,128]{1,0:T(8,128)(2,1)}', space=vmem, size = 0x8000, scoped, tag = 'scratch operand']
  %s0 = inlined_call_operand.hbm [shape: f32[256,384], index: 0, kind: input, shape index: {}]
  %s1 = inlined_call_operand.hbm [shape: bf16[384,128], index: 1, kind: input, shape index: {}]
  %s2 = inlined_call_operand.vmem [shape: f32[1,128], index: 2, kind: input, shape index: {}]
  %s3 = inlined_call_operand.hbm [shape: bf16[128,128], index: 3, kind: input, shape index: {}]
  %s4 = inlined_call_operand.vmem [shape: f32[1,128], index: 4, kind: input, shape index: {}]
  %s5 = inlined_call_operand.hbm [shape: f32[256,128], index: 5, kind: output, shape index: {}]
  %s6 = sld [smem:[#allocation0]]
  $region69: #{tpu_custom_call.1} parent=0
    _
  %s8 = ssub.s32 1, %s6
  %s9 = scalar_select 0, %s8, %s6
  $region1: #{tpu_custom_call.1} parent=0
    #allocation3 [shape = 'u8[393216]{0}', space=vmem, size = 0x60000, scoped, tag = 'input window, operand 0']
    #allocation4 [shape = 's32[2]{0}', space=sflag, size = 0x8, scoped, tag = 'scoped memory for tpu_custom_call.1']
    #allocation5 [shape = 's32[2]{0}', space=sflag, size = 0x8, scoped, tag = 'scoped memory for tpu_custom_call.1']
    #allocation6 [shape = 'u8[98304]{0}', space=vmem, size = 0x18000, scoped, tag = 'input window, operand 1, single buffered']
    #allocation7 [shape = 's32[1]{0}', space=sflag, size = 0x4, scoped, tag = 'scoped memory for tpu_custom_call.1']
    #allocation8 [shape = 'u8[32768]{0}', space=vmem, size = 0x8000, scoped, tag = 'input window, operand 3, single buffered']
    #allocation9 [shape = 'u8[131072]{0}', space=vmem, size = 0x20000, scoped, tag = 'output window, operand 0']
    %10 = vsyncpa [#allocation4], 0
    %s11 = scalar_lea.sflag [#allocation4], 1
    %12 = vsyncpa %s11, 0
    %13 = vsyncpa [#allocation7], 0
    %14 = vsyncpa [#allocation5], 0
    %s15 = scalar_lea.sflag [#allocation5], 1
    %16 = vsyncpa %s15, 0
    loop: start=0, step=1, limit=4
    $region2: #{tpu_custom_call.1} parent=1 // loop_pre_header
      _
    $region3: #{tpu_custom_call.1} parent=1 // loop_header
      %s18 = sphi 0, %s22
      %p19 = scmp.ge.s32.totalorder %s18, 4
      %s25 = sphi 0, %s37
      %s26 = sphi 0, %s33
      %s27 = sphi 0, %s25
      %s28 = sphi 0, %s26
      %s29 = sphi 0, %s27
      %s30 = sphi 0, %s28
      %s40 = sphi 0, %s42
      %s43 = sphi 0, %s40
      %s44 = sphi 0, %s43
      %s60 = sphi 0, %s44
      %s64 = sphi 0, %s64
      %s66 = sphi 0, %s64
      %s67 = sphi 0, %s66
      %s81 = sphi 0, %s67
      %s85 = sphi 0, %s85
      %s87 = sphi 0, %s85
      %s88 = sphi 0, %s87
      %s102 = sphi 0, %s88
      %s108 = sphi 0, %s110
      %s111 = sphi 0, %s108
      %s112 = sphi 0, %s111
      %s128 = sphi 0, %s112
      %s134 = sphi 0, %s136
      %s137 = sphi 0, %s134
      %s138 = sphi 0, %s137
      %s154 = sphi 0, %s138
      %s162 = sphi 0, %s164
      %s165 = sphi 0, %s162
      %s166 = sphi 0, %s165
      %s182 = sphi 0, %s166
    $region4: #{tpu_custom_call.1} parent=1 // loop_header_branch
      %21 = sbr.rel (%p19) target = $region8
    $region5: #{tpu_custom_call.1} parent=1 // loop_body
      %s23 = ssub.s32 %s18, 1
      %s24 = ssub.s32 %s18, 2
      %s31 = sadd.s32 1, %s26
      %p32 = scmp.ge.s32.totalorder %s31, 1
      %s33 = scalar_select %p32, 0, %s31
      %s34 = sadd.s32 1, %s25
      %s35 = scalar_select %p32, %s34, %s25
      %p36 = scmp.ge.s32.totalorder %s35, 2
      %s37 = scalar_select %p36, 0, %s35
      %s38 = ssub.s32 %s25, %s37
      %p39 = scmp.eq.s32.totalorder %s38, 0
      %s41 = sadd.s32 %s40, 1
      %s42 = scalar_select %p39, %s40, %s41
      %p45 = pneg %p39
      %p46 = scmp.eq.s32.totalorder %s18, 1
      %p47 = por %p45, %p46
      %p48 = scmp.ne.s32.totalorder %s40, %s43
      %p49 = scmp.eq.s32.totalorder %s18, 0
      %p50 = por %p48, %p49
      %p51 = scmp.ne.s32.totalorder %s40, %s43
      %p52 = scmp.eq.s32.totalorder %s23, 1
      %p53 = por %p51, %p52
      %p54 = scmp.ne.s32.totalorder %s43, %s44
      %p55 = scmp.eq.s32.totalorder %s23, 0
      %p56 = por %p54, %p55
      %p57 = scmp.ne.s32.totalorder %s43, %s44
      %p58 = scmp.eq.s32.totalorder %s24, 1
      %p59 = por %p57, %p58
      %p61 = scmp.ne.s32.totalorder %s44, %s60
      %p62 = scmp.eq.s32.totalorder %s24, 0
      %p63 = por %p61, %p62
      %s65 = sadd.s32 %s64, 1
      %p68 = scmp.eq.s32.totalorder %s18, 1
      %p69 = scmp.ne.s32.totalorder %s64, %s66
      %p70 = scmp.eq.s32.totalorder %s18, 0
      %p71 = por %p69, %p70
      %p72 = scmp.ne.s32.totalorder %s64, %s66
      %p73 = scmp.eq.s32.totalorder %s23, 1
      %p74 = por %p72, %p73
      %p75 = scmp.ne.s32.totalorder %s66, %s67
      %p76 = scmp.eq.s32.totalorder %s23, 0
      %p77 = por %p75, %p76
      %p78 = scmp.ne.s32.totalorder %s66, %s67
      %p79 = scmp.eq.s32.totalorder %s24, 1
      %p80 = por %p78, %p79
      %p82 = scmp.ne.s32.totalorder %s67, %s81
      %p83 = scmp.eq.s32.totalorder %s24, 0
      %p84 = por %p82, %p83
      %s86 = sadd.s32 %s85, 1
      %p89 = scmp.eq.s32.totalorder %s18, 1
      %p90 = scmp.ne.s32.totalorder %s85, %s87
      %p91 = scmp.eq.s32.totalorder %s18, 0
      %p92 = por %p90, %p91
      %p93 = scmp.ne.s32.totalorder %s85, %s87
      %p94 = scmp.eq.s32.totalorder %s23, 1
      %p95 = por %p93, %p94
      %p96 = scmp.ne.s32.totalorder %s87, %s88
      %p97 = scmp.eq.s32.totalorder %s23, 0
      %p98 = por %p96, %p97
      %p99 = scmp.ne.s32.totalorder %s87, %s88
      %p100 = scmp.eq.s32.totalorder %s24, 1
      %p101 = por %p99, %p100
      %p103 = scmp.ne.s32.totalorder %s88, %s102
      %p104 = scmp.eq.s32.totalorder %s24, 0
      %p105 = por %p103, %p104
      %s106 = ssub.s32 %s26, %s33
      %p107 = scmp.eq.s32.totalorder %s106, 0
      %s109 = sadd.s32 %s108, 1
      %s110 = scalar_select %p107, %s108, %s109
      %p113 = pneg %p107
      %p114 = scmp.eq.s32.totalorder %s18, 1
      %p115 = por %p113, %p114
      %p116 = scmp.ne.s32.totalorder %s108, %s111
      %p117 = scmp.eq.s32.totalorder %s18, 0
      %p118 = por %p116, %p117
      %p119 = scmp.ne.s32.totalorder %s108, %s111
      %p120 = scmp.eq.s32.totalorder %s23, 1
      %p121 = por %p119, %p120
      %p122 = scmp.ne.s32.totalorder %s111, %s112
      %p123 = scmp.eq.s32.totalorder %s23, 0
      %p124 = por %p122, %p123
      %p125 = scmp.ne.s32.totalorder %s111, %s112
      %p126 = scmp.eq.s32.totalorder %s24, 1
      %p127 = por %p125, %p126
      %p129 = scmp.ne.s32.totalorder %s112, %s128
      %p130 = scmp.eq.s32.totalorder %s24, 0
      %p131 = por %p129, %p130
      %s132 = ssub.s32 %s26, %s33
      %p133 = scmp.eq.s32.totalorder %s132, 0
      %s135 = sadd.s32 %s134, 1
      %s136 = scalar_select %p133, %s134, %s135
      %p139 = pneg %p133
      %p140 = scmp.eq.s32.totalorder %s18, 1
      %p141 = por %p139, %p140
      %p142 = scmp.ne.s32.totalorder %s134, %s137
      %p143 = scmp.eq.s32.totalorder %s18, 0
      %p144 = por %p142, %p143
      %p145 = scmp.ne.s32.totalorder %s134, %s137
      %p146 = scmp.eq.s32.totalorder %s23, 1
      %p147 = por %p145, %p146
      %p148 = scmp.ne.s32.totalorder %s137, %s138
      %p149 = scmp.eq.s32.totalorder %s23, 0
      %p150 = por %p148, %p149
      %p151 = scmp.ne.s32.totalorder %s137, %s138
      %p152 = scmp.eq.s32.totalorder %s24, 1
      %p153 = por %p151, %p152
      %p155 = scmp.ne.s32.totalorder %s138, %s154
      %p156 = scmp.eq.s32.totalorder %s24, 0
      %p157 = por %p155, %p156
      %s158 = ssub.s32 %s25, %s37
      %s159 = ssub.s32 %s26, %s33
      %s160 = sor.u32 %s158, %s159
      %p161 = scmp.eq.s32.totalorder %s160, 0
      %s163 = sadd.s32 %s162, 1
      %s164 = scalar_select %p161, %s162, %s163
      %p167 = pneg %p161
      %p168 = scmp.eq.s32.totalorder %s18, 1
      %p169 = por %p167, %p168
      %p170 = scmp.ne.s32.totalorder %s162, %s165
      %p171 = scmp.eq.s32.totalorder %s18, 0
      %p172 = por %p170, %p171
      %p173 = scmp.ne.s32.totalorder %s162, %s165
      %p174 = scmp.eq.s32.totalorder %s23, 1
      %p175 = por %p173, %p174
      %p176 = scmp.ne.s32.totalorder %s165, %s166
      %p177 = scmp.eq.s32.totalorder %s23, 0
      %p178 = por %p176, %p177
      %p179 = scmp.ne.s32.totalorder %s165, %s166
      %p180 = scmp.eq.s32.totalorder %s24, 1
      %p181 = por %p179, %p180
      %p183 = scmp.ne.s32.totalorder %s166, %s182
      %p184 = scmp.eq.s32.totalorder %s24, 0
      %p185 = por %p183, %p184
      %p186 = scmp.le.s32.totalorder 1, %s18
      %p187 = scmp.lt.s32.totalorder %s18, 3
      %p188 = pnand %p186, %p187
      %p189 = pneg %p188
      // Predicated region
      $region9: #{tpu_custom_call.1} parent=5 // pred_check
        _
      $region10: #{tpu_custom_call.1} parent=5 // pred_check_branch
        %191 = sbr.rel (%p188) target = $region12
      $region11: #{tpu_custom_call.1} parent=5 // pred_region
        %s192 = ssub.s32 %s18, 1
        // Predicated region
        $region13: #{tpu_custom_call.1} parent=11 // pred_check
          %p193 = pneg %p77
        $region14: #{tpu_custom_call.1} parent=11 // pred_check_branch
          %195 = sbr.rel (%p193) target = $region16
        $region15: #{tpu_custom_call.1} parent=11 // pred_region
          %197 = vsyncadd [#allocation7], 0
          %s198 = sshll.u32 %s1, 4
          %s199 = int_to_ptr.hbm [resolvable:$true] %s198
          %s200 = sshll.u32 [#allocation6], 4
          %s201 = int_to_ptr.vmem [resolvable:$true] %s200
          %206 = dma.hbm_to_vmem [thread:$0]  %s199, 3072, %s201, [#allocation7], 64, 64, 4
        $region16: #{tpu_custom_call.1} parent=11 // pred_fallthru
          _
        // Predicated region
        $region17: #{tpu_custom_call.1} parent=11 // pred_check
          %p207 = pneg %p98
        $region18: #{tpu_custom_call.1} parent=11 // pred_check_branch
          %209 = sbr.rel (%p207) target = $region20
        $region19: #{tpu_custom_call.1} parent=11 // pred_region
          _
        $region20: #{tpu_custom_call.1} parent=11 // pred_fallthru
          _
        // Predicated region
        $region21: #{tpu_custom_call.1} parent=11 // pred_check
          %p210 = pneg %p124
        $region22: #{tpu_custom_call.1} parent=11 // pred_check_branch
          %212 = sbr.rel (%p210) target = $region24
        $region23: #{tpu_custom_call.1} parent=11 // pred_region
          %214 = vsyncadd [#allocation7], 0
          %s215 = smul.addr %s28, 4
          %s216 = scalar_lea.hbm %s3, %s215
          %s217 = sshll.u32 %s216, 4
          %s218 = int_to_ptr.hbm [resolvable:$true] %s217
          %s219 = sshll.u32 [#allocation8], 4
          %s220 = int_to_ptr.vmem [resolvable:$true] %s219
          %225 = dma.hbm_to_vmem [thread:$0]  %s218, 1024, %s220, [#allocation7], 64, 64, 4
        $region24: #{tpu_custom_call.1} parent=11 // pred_fallthru
          _
        // Predicated region
        $region25: #{tpu_custom_call.1} parent=11 // pred_check
          %p226 = pneg %p150
        $region26: #{tpu_custom_call.1} parent=11 // pred_check_branch
          %228 = sbr.rel (%p226) target = $region28
        $region27: #{tpu_custom_call.1} parent=11 // pred_region
          %p229 = scmp.lt.s32.totalorder %s28, 0
          %s230 = scalar_select %p229, %s28, 0
          %s231 = scalar_lea.vmem %s4, %s230
        $region28: #{tpu_custom_call.1} parent=11 // pred_fallthru
          _
      $region12: #{tpu_custom_call.1} parent=5 // pred_fallthru
        _
      %p232 = scmp.lt.s32.totalorder %s18, 2
      // Predicated region
      $region29: #{tpu_custom_call.1} parent=5 // pred_check
        %p233 = pneg %p232
      $region30: #{tpu_custom_call.1} parent=5 // pred_check_branch
        %235 = sbr.rel (%p233) target = $region32
      $region31: #{tpu_custom_call.1} parent=5 // pred_region
        // Predicated region
        $region33: #{tpu_custom_call.1} parent=31 // pred_check
          %p236 = pneg %p50
        $region34: #{tpu_custom_call.1} parent=31 // pred_check_branch
          %238 = sbr.rel (%p236) target = $region36
        $region35: #{tpu_custom_call.1} parent=31 // pred_region
          %s239 = sand.u32 %s40, 1
          %s240 = scalar_lea.sflag [#allocation4], %s239
          %s241 = sand.u32 %s40, 1
          %s242 = smul.addr %s241, 384
          %s243 = scalar_lea.vmem [#allocation3], %s242
          %s244 = smul.u32 16, %s25
          %246 = vsyncadd %s240, 0
          %s247 = smul.addr %s244, 3
          %s248 = smul.addr %s247, 8
          %s249 = scalar_lea.hbm %s0, %s248
          %s250 = sshll.u32 %s249, 4
          %s251 = int_to_ptr.hbm [resolvable:$true] %s250
          %s252 = sshll.u32 %s243, 4
          %s253 = int_to_ptr.vmem [resolvable:$true] %s252
          %258 = dma.hbm_to_vmem [thread:$0]  %s251, 6144, %s253, %s240, 384, 384, 24
        $region36: #{tpu_custom_call.1} parent=31 // pred_fallthru
          _
      $region32: #{tpu_custom_call.1} parent=5 // pred_fallthru
        _
      %p259 = scmp.le.s32.totalorder 1, %s18
      %p260 = scmp.lt.s32.totalorder %s18, 3
      %p261 = pnand %p259, %p260
      %p262 = pneg %p261
      // Predicated region
      $region37: #{tpu_custom_call.1} parent=5 // pred_check
        _
      $region38: #{tpu_custom_call.1} parent=5 // pred_check_branch
        %264 = sbr.rel (%p261) target = $region40
      $region39: #{tpu_custom_call.1} parent=5 // pred_region
        %s265 = ssub.s32 %s18, 1
        %s266 = sand.u32 %s43, 1
        %s267 = scalar_lea.sflag [#allocation4], %s266
        %s268 = sand.u32 %s43, 1
        %s269 = smul.addr %s268, 384
        %s270 = scalar_lea.vmem [#allocation3], %s269
        // Predicated region
        $region41: #{tpu_custom_call.1} parent=39 // pred_check
          %p271 = pneg %p56
        $region42: #{tpu_custom_call.1} parent=39 // pred_check_branch
          %273 = sbr.rel (%p271) target = $region44
        $region43: #{tpu_custom_call.1} parent=39 // pred_region
          %275 = dma.done %s267, 6144
        $region44: #{tpu_custom_call.1} parent=39 // pred_fallthru
          _
        // Predicated region
        $region45: #{tpu_custom_call.1} parent=39 // pred_check
          %p276 = pneg %p77
        $region46: #{tpu_custom_call.1} parent=39 // pred_check_branch
          %278 = sbr.rel (%p276) target = $region48
        $region47: #{tpu_custom_call.1} parent=39 // pred_region
          %280 = dma.done [#allocation7], 3072
        $region48: #{tpu_custom_call.1} parent=39 // pred_fallthru
          _
        // Predicated region
        $region49: #{tpu_custom_call.1} parent=39 // pred_check
          %p281 = pneg %p124
        $region50: #{tpu_custom_call.1} parent=39 // pred_check_branch
          %283 = sbr.rel (%p281) target = $region52
        $region51: #{tpu_custom_call.1} parent=39 // pred_region
          %285 = dma.done [#allocation7], 1024
        $region52: #{tpu_custom_call.1} parent=39 // pred_fallthru
          _
        %s286 = sand.u32 %s43, 1
        %s287 = scalar_lea.sflag [#allocation4], %s286
        %s288 = sand.u32 %s43, 1
        %s289 = smul.addr %s288, 384
        %s290 = scalar_lea.vmem [#allocation3], %s289
        %p291 = pneg %p56
        %p292 = pneg %p53
        %p293 = pneg %p77
        %p294 = pneg %p74
        %p295 = pneg %p98
        %p296 = pneg %p95
        %p297 = pneg %p124
        %p298 = pneg %p121
        %p299 = scmp.lt.s32.totalorder %s28, 0
        %s300 = scalar_select %p299, %s28, 0
        %s301 = scalar_lea.vmem %s4, %s300
        %p302 = pneg %p150
        %p303 = pneg %p147
        %p304 = pneg %p178
        %p305 = pneg %p175
        %s306 = sand.u32 %s165, 1
        %s307 = scalar_lea.sflag [#allocation5], %s306
        %s308 = sand.u32 %s165, 1
        %s309 = smul.addr %s308, 128
        %s310 = scalar_lea.vmem [#allocation9], %s309
        %s311 = smul.u32 16, %s27
        %p312 = scmp.lt.s32.totalorder %s28, 0
        %s313 = scalar_select %p312, %s28, 0
        %s314 = scalar_lea.vmem %s4, %s313
        %s315 = smul.u32 16, %s27
        %p316 = scmp.eq.s32.totalorder %s28, 0
        // Predicated region
        $region53: #{tpu_custom_call.1} parent=39 // pred_check
          %p317 = pneg %p316
        $region54: #{tpu_custom_call.1} parent=39 // pred_check_branch
          %319 = sbr.rel (%p317) target = $region56
        $region55: #{tpu_custom_call.1} parent=39 // pred_region
          %v320 = vld [vmem:[%s270] sm:$0xff]
          %v321 = vld [vmem:[%s270 + $0x8] sm:$0xff]
          %v322 = vld [vmem:[%s270 + $0x10] sm:$0xff]
          %v323 = vld [vmem:[%s270 + $0x18] sm:$0xff]
          %v324 = vld [vmem:[%s270 + $0x20] sm:$0xff]
          %v325 = vld [vmem:[%s270 + $0x28] sm:$0xff]
          %v326 = vld [vmem:[%s270 + $0x30] sm:$0xff]
          %v327 = vld [vmem:[%s270 + $0x38] sm:$0xff]
          %v328 = vld [vmem:[%s270 + $0x40] sm:$0xff]
          %v329 = vld [vmem:[%s270 + $0x48] sm:$0xff]
          %v330 = vld [vmem:[%s270 + $0x50] sm:$0xff]
          %v331 = vld [vmem:[%s270 + $0x58] sm:$0xff]
          %v332 = vld [vmem:[%s270 + $0x60] sm:$0xff]
          %v333 = vld [vmem:[%s270 + $0x68] sm:$0xff]
          %v334 = vld [vmem:[%s270 + $0x70] sm:$0xff]
          %v335 = vld [vmem:[%s270 + $0x78] sm:$0xff]
          %v336 = vld [vmem:[%s270 + $0x80] sm:$0xff]
          %v337 = vld [vmem:[%s270 + $0x88] sm:$0xff]
          %v338 = vld [vmem:[%s270 + $0x90] sm:$0xff]
          %v339 = vld [vmem:[%s270 + $0x98] sm:$0xff]
          %v340 = vld [vmem:[%s270 + $0xa0] sm:$0xff]
          %v341 = vld [vmem:[%s270 + $0xa8] sm:$0xff]
          %v342 = vld [vmem:[%s270 + $0xb0] sm:$0xff]
          %v343 = vld [vmem:[%s270 + $0xb8] sm:$0xff]
          %v344 = vld [vmem:[%s270 + $0xc0] sm:$0xff]
          %v345 = vld [vmem:[%s270 + $0xc8] sm:$0xff]
          %v346 = vld [vmem:[%s270 + $0xd0] sm:$0xff]
          %v347 = vld [vmem:[%s270 + $0xd8] sm:$0xff]
          %v348 = vld [vmem:[%s270 + $0xe0] sm:$0xff]
          %v349 = vld [vmem:[%s270 + $0xe8] sm:$0xff]
          %v350 = vld [vmem:[%s270 + $0xf0] sm:$0xff]
          %v351 = vld [vmem:[%s270 + $0xf8] sm:$0xff]
          %v352 = vld [vmem:[%s270 + $0x100] sm:$0xff]
          %v353 = vld [vmem:[%s270 + $0x108] sm:$0xff]
          %v354 = vld [vmem:[%s270 + $0x110] sm:$0xff]
          %v355 = vld [vmem:[%s270 + $0x118] sm:$0xff]
          %v356 = vld [vmem:[%s270 + $0x120] sm:$0xff]
          %v357 = vld [vmem:[%s270 + $0x128] sm:$0xff]
          %v358 = vld [vmem:[%s270 + $0x130] sm:$0xff]
          %v359 = vld [vmem:[%s270 + $0x138] sm:$0xff]
          %v360 = vld [vmem:[%s270 + $0x140] sm:$0xff]
          %v361 = vld [vmem:[%s270 + $0x148] sm:$0xff]
          %v362 = vld [vmem:[%s270 + $0x150] sm:$0xff]
          %v363 = vld [vmem:[%s270 + $0x158] sm:$0xff]
          %v364 = vld [vmem:[%s270 + $0x160] sm:$0xff]
          %v365 = vld [vmem:[%s270 + $0x168] sm:$0xff]
          %v366 = vld [vmem:[%s270 + $0x170] sm:$0xff]
          %v367 = vld [vmem:[%s270 + $0x178] sm:$0xff]
          %v368 = vpack.c.bf16 %v323, %v320
          %v369 = vpack.c.bf16 %v324, %v321
          %v370 = vpack.c.bf16 %v325, %v322
          %v371 = vpack.c.bf16 %v329, %v326
          %v372 = vpack.c.bf16 %v330, %v327
          %v373 = vpack.c.bf16 %v331, %v328
          %v374 = vpack.c.bf16 %v335, %v332
          %v375 = vpack.c.bf16 %v336, %v333
          %v376 = vpack.c.bf16 %v337, %v334
          %v377 = vpack.c.bf16 %v341, %v338
          %v378 = vpack.c.bf16 %v342, %v339
          %v379 = vpack.c.bf16 %v343, %v340
          %v380 = vpack.c.bf16 %v347, %v344
          %v381 = vpack.c.bf16 %v348, %v345
          %v382 = vpack.c.bf16 %v349, %v346
          %v383 = vpack.c.bf16 %v353, %v350
          %v384 = vpack.c.bf16 %v354, %v351
          %v385 = vpack.c.bf16 %v355, %v352
          %v386 = vpack.c.bf16 %v359, %v356
          %v387 = vpack.c.bf16 %v360, %v357
          %v388 = vpack.c.bf16 %v361, %v358
          %v389 = vpack.c.bf16 %v365, %v362
          %v390 = vpack.c.bf16 %v366, %v363
          %v391 = vpack.c.bf16 %v367, %v364
          %v392 = vld [vmem:[#allocation6] sm:$0xf]
          %v393 = vld [vmem:[#allocation6 + $0x4] sm:$0xf]
          %v394 = vld [vmem:[#allocation6 + $0x8] sm:$0xf]
          %v395 = vld [vmem:[#allocation6 + $0xc] sm:$0xf]
          %v396 = vld [vmem:[#allocation6 + $0x10] sm:$0xf]
          %v397 = vld [vmem:[#allocation6 + $0x14] sm:$0xf]
          %v398 = vld [vmem:[#allocation6 + $0x18] sm:$0xf]
          %v399 = vld [vmem:[#allocation6 + $0x1c] sm:$0xf]
          %v400 = vld [vmem:[#allocation6 + $0x20] sm:$0xf]
          %v401 = vld [vmem:[#allocation6 + $0x24] sm:$0xf]
          %v402 = vld [vmem:[#allocation6 + $0x28] sm:$0xf]
          %v403 = vld [vmem:[#allocation6 + $0x2c] sm:$0xf]
          %v404 = vld [vmem:[#allocation6 + $0x30] sm:$0xf]
          %v405 = vld [vmem:[#allocation6 + $0x34] sm:$0xf]
          %v406 = vld [vmem:[#allocation6 + $0x38] sm:$0xf]
          %v407 = vld [vmem:[#allocation6 + $0x3c] sm:$0xf]
          %v408 = vld [vmem:[#allocation6 + $0x40] sm:$0xf]
          %v409 = vld [vmem:[#allocation6 + $0x44] sm:$0xf]
          %v410 = vld [vmem:[#allocation6 + $0x48] sm:$0xf]
          %v411 = vld [vmem:[#allocation6 + $0x4c] sm:$0xf]
          %v412 = vld [vmem:[#allocation6 + $0x50] sm:$0xf]
          %v413 = vld [vmem:[#allocation6 + $0x54] sm:$0xf]
          %v414 = vld [vmem:[#allocation6 + $0x58] sm:$0xf]
          %v415 = vld [vmem:[#allocation6 + $0x5c] sm:$0xf]
          %v416 = vld [vmem:[#allocation6 + $0x60] sm:$0xf]
          %v417 = vld [vmem:[#allocation6 + $0x64] sm:$0xf]
          %v418 = vld [vmem:[#allocation6 + $0x68] sm:$0xf]
          %v419 = vld [vmem:[#allocation6 + $0x6c] sm:$0xf]
          %v420 = vld [vmem:[#allocation6 + $0x70] sm:$0xf]
          %v421 = vld [vmem:[#allocation6 + $0x74] sm:$0xf]
          %v422 = vld [vmem:[#allocation6 + $0x78] sm:$0xf]
          %v423 = vld [vmem:[#allocation6 + $0x7c] sm:$0xf]
          %v424 = vld [vmem:[#allocation6 + $0x80] sm:$0xf]
          %v425 = vld [vmem:[#allocation6 + $0x84] sm:$0xf]
          %v426 = vld [vmem:[#allocation6 + $0x88] sm:$0xf]
          %v427 = vld [vmem:[#allocation6 + $0x8c] sm:$0xf]
          %v428 = vld [vmem:[#allocation6 + $0x90] sm:$0xf]
          %v429 = vld [vmem:[#allocation6 + $0x94] sm:$0xf]
          %v430 = vld [vmem:[#allocation6 + $0x98] sm:$0xf]
          %v431 = vld [vmem:[#allocation6 + $0x9c] sm:$0xf]
          %v432 = vld [vmem:[#allocation6 + $0xa0] sm:$0xf]
          %v433 = vld [vmem:[#allocation6 + $0xa4] sm:$0xf]
          %v434 = vld [vmem:[#allocation6 + $0xa8] sm:$0xf]
          %v435 = vld [vmem:[#allocation6 + $0xac] sm:$0xf]
          %v436 = vld [vmem:[#allocation6 + $0xb0] sm:$0xf]
          %v437 = vld [vmem:[#allocation6 + $0xb4] sm:$0xf]
          %v438 = vld [vmem:[#allocation6 + $0xb8] sm:$0xf]
          %v439 = vld [vmem:[#allocation6 + $0xbc] sm:$0xf]
          %v440 = vld [vmem:[%s2] sm:$0x1]
          %v442 = vperm.slane %v440, 0
          %v492 = vunpack.c.l.b16 %v392
          %v493 = vunpack.c.l.b16 %v393
          %v494 = vunpack.c.l.b16 %v394
          %v495 = vunpack.c.l.b16 %v395
          %v496 = vunpack.c.l.b16 %v396
          %v497 = vunpack.c.l.b16 %v397
          %v498 = vunpack.c.l.b16 %v398
          %v499 = vunpack.c.l.b16 %v399
          %v500 = vunpack.c.l.b16 %v400
          %v501 = vunpack.c.l.b16 %v401
          %v502 = vunpack.c.l.b16 %v402
          %v503 = vunpack.c.l.b16 %v403
          %v504 = vunpack.c.l.b16 %v404
          %v505 = vunpack.c.l.b16 %v405
          %v506 = vunpack.c.l.b16 %v406
          %v507 = vunpack.c.l.b16 %v407
          %v508 = vunpack.c.l.b16 %v408
          %v509 = vunpack.c.l.b16 %v409
          %v510 = vunpack.c.l.b16 %v410
          %v511 = vunpack.c.l.b16 %v411
          %v512 = vunpack.c.l.b16 %v412
          %v513 = vunpack.c.l.b16 %v413
          %v514 = vunpack.c.l.b16 %v414
          %v515 = vunpack.c.l.b16 %v415
          %v516 = vunpack.c.l.b16 %v416
          %v517 = vunpack.c.l.b16 %v417
          %v518 = vunpack.c.l.b16 %v418
          %v519 = vunpack.c.l.b16 %v419
          %v520 = vunpack.c.l.b16 %v420
          %v521 = vunpack.c.l.b16 %v421
          %v522 = vunpack.c.l.b16 %v422
          %v523 = vunpack.c.l.b16 %v423
          %v524 = vunpack.c.l.b16 %v424
          %v525 = vunpack.c.l.b16 %v425
          %v526 = vunpack.c.l.b16 %v426
          %v527 = vunpack.c.l.b16 %v427
          %v528 = vunpack.c.l.b16 %v428
          %v529 = vunpack.c.l.b16 %v429
          %v530 = vunpack.c.l.b16 %v430
          %v531 = vunpack.c.l.b16 %v431
          %v532 = vunpack.c.l.b16 %v432
          %v533 = vunpack.c.l.b16 %v433
          %v534 = vunpack.c.l.b16 %v434
          %v535 = vunpack.c.l.b16 %v435
          %v536 = vunpack.c.l.b16 %v436
          %v537 = vunpack.c.l.b16 %v437
          %v538 = vunpack.c.l.b16 %v438
          %v539 = vunpack.c.l.b16 %v439
          %v540 = vpack.c.b16 %v493, %v492
          %v541 = vpack.c.b16 %v495, %v494
          %v542 = vpack.c.b16 %v497, %v496
          %v543 = vpack.c.b16 %v499, %v498
          %v544 = vpack.c.b16 %v501, %v500
          %v545 = vpack.c.b16 %v503, %v502
          %v546 = vpack.c.b16 %v505, %v504
          %v547 = vpack.c.b16 %v507, %v506
          %v548 = vpack.c.b16 %v509, %v508
          %v549 = vpack.c.b16 %v511, %v510
          %v550 = vpack.c.b16 %v513, %v512
          %v551 = vpack.c.b16 %v515, %v514
          %v552 = vpack.c.b16 %v517, %v516
          %v553 = vpack.c.b16 %v519, %v518
          %v554 = vpack.c.b16 %v521, %v520
          %v555 = vpack.c.b16 %v523, %v522
          %v556 = vpack.c.b16 %v525, %v524
          %v557 = vpack.c.b16 %v527, %v526
          %v558 = vpack.c.b16 %v529, %v528
          %v559 = vpack.c.b16 %v531, %v530
          %v560 = vpack.c.b16 %v533, %v532
          %v561 = vpack.c.b16 %v535, %v534
          %v562 = vpack.c.b16 %v537, %v536
          %v563 = vpack.c.b16 %v539, %v538
          %588 = vmatpush.bf16.msra.mxu0 %v547
          %589 = vmatpush.bf16.msra.mxu0 %v546
          %590 = vmatpush.bf16.msra.mxu0 %v545
          %591 = vmatpush.bf16.msra.mxu0 %v544
          %592 = vmatpush.bf16.msra.mxu0 %v543
          %593 = vmatpush.bf16.msra.mxu0 %v542
          %594 = vmatpush.bf16.msra.mxu0 %v541
          %595 = vmatpush.bf16.msra.mxu0 %v540
          %596 = vmatmul.bf16.gmra.mxu0 %v368
          %v597 = vpop.f32.mrf.mxu0
          %v598 = vadd.f32 %v442, %v597
          %v599 = vpop.f32.mrf.mxu0
          %v600 = vadd.f32 %v442, %v599
          %601 = vmatmul.bf16.gmra.mxu0 %v371
          %v602 = vpop.f32.mrf.mxu0
          %v603 = vadd.f32 %v442, %v602
          %v604 = vpop.f32.mrf.mxu0
          %v605 = vadd.f32 %v442, %v604
          %606 = vmatmul.bf16.gmra.mxu0 %v374
          %v607 = vpop.f32.mrf.mxu0
          %v608 = vadd.f32 %v442, %v607
          %v609 = vpop.f32.mrf.mxu0
          %v610 = vadd.f32 %v442, %v609
          %611 = vmatmul.bf16.gmra.mxu0 %v377
          %v612 = vpop.f32.mrf.mxu0
          %v613 = vadd.f32 %v442, %v612
          %v614 = vpop.f32.mrf.mxu0
          %v615 = vadd.f32 %v442, %v614
          %616 = vmatmul.bf16.gmra.mxu0 %v380
          %v617 = vpop.f32.mrf.mxu0
          %v618 = vadd.f32 %v442, %v617
          %v619 = vpop.f32.mrf.mxu0
          %v620 = vadd.f32 %v442, %v619
          %621 = vmatmul.bf16.gmra.mxu0 %v383
          %v622 = vpop.f32.mrf.mxu0
          %v623 = vadd.f32 %v442, %v622
          %v624 = vpop.f32.mrf.mxu0
          %v625 = vadd.f32 %v442, %v624
          %626 = vmatmul.bf16.gmra.mxu0 %v386
          %v627 = vpop.f32.mrf.mxu0
          %v628 = vadd.f32 %v442, %v627
          %v629 = vpop.f32.mrf.mxu0
          %v630 = vadd.f32 %v442, %v629
          %631 = vmatmul.bf16.gmra.mxu0 %v389
          %v632 = vpop.f32.mrf.mxu0
          %v633 = vadd.f32 %v442, %v632
          %v634 = vpop.f32.mrf.mxu0
          %v635 = vadd.f32 %v442, %v634
          %636 = vdwg.mxu0
          %637 = vmatpush.bf16.msra.mxu0 %v555
          %638 = vmatpush.bf16.msra.mxu0 %v554
          %639 = vmatpush.bf16.msra.mxu0 %v553
          %640 = vmatpush.bf16.msra.mxu0 %v552
          %641 = vmatpush.bf16.msra.mxu0 %v551
          %642 = vmatpush.bf16.msra.mxu0 %v550
          %643 = vmatpush.bf16.msra.mxu0 %v549
          %644 = vmatpush.bf16.msra.mxu0 %v548
          %645 = vmatmul.bf16.gmra.mxu0 %v369
          %v646 = vpop.f32.mrf.mxu0
          %v647 = vadd.f32 %v598, %v646
          %v648 = vpop.f32.mrf.mxu0
          %v649 = vadd.f32 %v600, %v648
          %650 = vmatmul.bf16.gmra.mxu0 %v372
          %v651 = vpop.f32.mrf.mxu0
          %v652 = vadd.f32 %v603, %v651
          %v653 = vpop.f32.mrf.mxu0
          %v654 = vadd.f32 %v605, %v653
          %655 = vmatmul.bf16.gmra.mxu0 %v375
          %v656 = vpop.f32.mrf.mxu0
          %v657 = vadd.f32 %v608, %v656
          %v658 = vpop.f32.mrf.mxu0
          %v659 = vadd.f32 %v610, %v658
          %660 = vmatmul.bf16.gmra.mxu0 %v378
          %v661 = vpop.f32.mrf.mxu0
          %v662 = vadd.f32 %v613, %v661
          %v663 = vpop.f32.mrf.mxu0
          %v664 = vadd.f32 %v615, %v663
          %665 = vmatmul.bf16.gmra.mxu0 %v381
          %v666 = vpop.f32.mrf.mxu0
          %v667 = vadd.f32 %v618, %v666
          %v668 = vpop.f32.mrf.mxu0
          %v669 = vadd.f32 %v620, %v668
          %670 = vmatmul.bf16.gmra.mxu0 %v384
          %v671 = vpop.f32.mrf.mxu0
          %v672 = vadd.f32 %v623, %v671
          %v673 = vpop.f32.mrf.mxu0
          %v674 = vadd.f32 %v625, %v673
          %675 = vmatmul.bf16.gmra.mxu0 %v387
          %v676 = vpop.f32.mrf.mxu0
          %v677 = vadd.f32 %v628, %v676
          %v678 = vpop.f32.mrf.mxu0
          %v679 = vadd.f32 %v630, %v678
          %680 = vmatmul.bf16.gmra.mxu0 %v390
          %v681 = vpop.f32.mrf.mxu0
          %v682 = vadd.f32 %v633, %v681
          %v683 = vpop.f32.mrf.mxu0
          %v684 = vadd.f32 %v635, %v683
          %685 = vdwg.mxu0
          %686 = vmatpush.bf16.msra.mxu0 %v563
          %687 = vmatpush.bf16.msra.mxu0 %v562
          %688 = vmatpush.bf16.msra.mxu0 %v561
          %689 = vmatpush.bf16.msra.mxu0 %v560
          %690 = vmatpush.bf16.msra.mxu0 %v559
          %691 = vmatpush.bf16.msra.mxu0 %v558
          %692 = vmatpush.bf16.msra.mxu0 %v557
          %693 = vmatpush.bf16.msra.mxu0 %v556
          %694 = vmatmul.bf16.gmra.mxu0 %v370
          %v695 = vpop.f32.mrf.mxu0
          %v696 = vadd.f32 %v647, %v695
          %v697 = vpop.f32.mrf.mxu0
          %v698 = vadd.f32 %v649, %v697
          %699 = vmatmul.bf16.gmra.mxu0 %v373
          %v700 = vpop.f32.mrf.mxu0
          %v701 = vadd.f32 %v652, %v700
          %v702 = vpop.f32.mrf.mxu0
          %v703 = vadd.f32 %v654, %v702
          %704 = vmatmul.bf16.gmra.mxu0 %v376
          %v705 = vpop.f32.mrf.mxu0
          %v706 = vadd.f32 %v657, %v705
          %v707 = vpop.f32.mrf.mxu0
          %v708 = vadd.f32 %v659, %v707
          %709 = vmatmul.bf16.gmra.mxu0 %v379
          %v710 = vpop.f32.mrf.mxu0
          %v711 = vadd.f32 %v662, %v710
          %v712 = vpop.f32.mrf.mxu0
          %v713 = vadd.f32 %v664, %v712
          %714 = vmatmul.bf16.gmra.mxu0 %v382
          %v715 = vpop.f32.mrf.mxu0
          %v716 = vadd.f32 %v667, %v715
          %v717 = vpop.f32.mrf.mxu0
          %v718 = vadd.f32 %v669, %v717
          %719 = vmatmul.bf16.gmra.mxu0 %v385
          %v720 = vpop.f32.mrf.mxu0
          %v721 = vadd.f32 %v672, %v720
          %v722 = vpop.f32.mrf.mxu0
          %v723 = vadd.f32 %v674, %v722
          %724 = vmatmul.bf16.gmra.mxu0 %v388
          %v725 = vpop.f32.mrf.mxu0
          %v726 = vadd.f32 %v677, %v725
          %v727 = vpop.f32.mrf.mxu0
          %v728 = vadd.f32 %v679, %v727
          %729 = vmatmul.bf16.gmra.mxu0 %v391
          %v730 = vpop.f32.mrf.mxu0
          %v731 = vadd.f32 %v682, %v730
          %v732 = vpop.f32.mrf.mxu0
          %v733 = vadd.f32 %v684, %v732
          %734 = vdwg.mxu0
          %v735 = vmax.f32 %v696, 0.0
          %v736 = vmax.f32 %v698, 0.0
          %v737 = vmax.f32 %v701, 0.0
          %v738 = vmax.f32 %v703, 0.0
          %v739 = vmax.f32 %v706, 0.0
          %v740 = vmax.f32 %v708, 0.0
          %v741 = vmax.f32 %v711, 0.0
          %v742 = vmax.f32 %v713, 0.0
          %v743 = vmax.f32 %v716, 0.0
          %v744 = vmax.f32 %v718, 0.0
          %v745 = vmax.f32 %v721, 0.0
          %v746 = vmax.f32 %v723, 0.0
          %v747 = vmax.f32 %v726, 0.0
          %v748 = vmax.f32 %v728, 0.0
          %v749 = vmax.f32 %v731, 0.0
          %v750 = vmax.f32 %v733, 0.0
          %v751 = vpack.c.bf16 %v735, %v735
          %v752 = vpack.c.bf16 %v736, %v736
          %v753 = vpack.c.bf16 %v737, %v737
          %v754 = vpack.c.bf16 %v738, %v738
          %v755 = vpack.c.bf16 %v739, %v739
          %v756 = vpack.c.bf16 %v740, %v740
          %v757 = vpack.c.bf16 %v741, %v741
          %v758 = vpack.c.bf16 %v742, %v742
          %v759 = vpack.c.bf16 %v743, %v743
          %v760 = vpack.c.bf16 %v744, %v744
          %v761 = vpack.c.bf16 %v745, %v745
          %v762 = vpack.c.bf16 %v746, %v746
          %v763 = vpack.c.bf16 %v747, %v747
          %v764 = vpack.c.bf16 %v748, %v748
          %v765 = vpack.c.bf16 %v749, %v749
          %v766 = vpack.c.bf16 %v750, %v750
          %767 = vst [vmem:[#allocation2] sm:$0xf] %v751
          %768 = vst [vmem:[#allocation2 + $0x4] sm:$0xf] %v752
          %769 = vst [vmem:[#allocation2 + $0x8] sm:$0xf] %v753
          %770 = vst [vmem:[#allocation2 + $0xc] sm:$0xf] %v754
          %771 = vst [vmem:[#allocation2 + $0x10] sm:$0xf] %v755
          %772 = vst [vmem:[#allocation2 + $0x14] sm:$0xf] %v756
          %773 = vst [vmem:[#allocation2 + $0x18] sm:$0xf] %v757
          %774 = vst [vmem:[#allocation2 + $0x1c] sm:$0xf] %v758
          %775 = vst [vmem:[#allocation2 + $0x20] sm:$0xf] %v759
          %776 = vst [vmem:[#allocation2 + $0x24] sm:$0xf] %v760
          %777 = vst [vmem:[#allocation2 + $0x28] sm:$0xf] %v761
          %778 = vst [vmem:[#allocation2 + $0x2c] sm:$0xf] %v762
          %779 = vst [vmem:[#allocation2 + $0x30] sm:$0xf] %v763
          %780 = vst [vmem:[#allocation2 + $0x34] sm:$0xf] %v764
          %781 = vst [vmem:[#allocation2 + $0x38] sm:$0xf] %v765
          %782 = vst [vmem:[#allocation2 + $0x3c] sm:$0xf] %v766
        $region56: #{tpu_custom_call.1} parent=39 // pred_fallthru
          _
        %v783 = vld [vmem:[#allocation2] sm:$0xf]
        %v784 = vld [vmem:[#allocation2 + $0x4] sm:$0xf]
        %v785 = vld [vmem:[#allocation2 + $0x8] sm:$0xf]
        %v786 = vld [vmem:[#allocation2 + $0xc] sm:$0xf]
        %v787 = vld [vmem:[#allocation2 + $0x10] sm:$0xf]
        %v788 = vld [vmem:[#allocation2 + $0x14] sm:$0xf]
        %v789 = vld [vmem:[#allocation2 + $0x18] sm:$0xf]
        %v790 = vld [vmem:[#allocation2 + $0x1c] sm:$0xf]
        %v791 = vld [vmem:[#allocation2 + $0x20] sm:$0xf]
        %v792 = vld [vmem:[#allocation2 + $0x24] sm:$0xf]
        %v793 = vld [vmem:[#allocation2 + $0x28] sm:$0xf]
        %v794 = vld [vmem:[#allocation2 + $0x2c] sm:$0xf]
        %v795 = vld [vmem:[#allocation2 + $0x30] sm:$0xf]
        %v796 = vld [vmem:[#allocation2 + $0x34] sm:$0xf]
        %v797 = vld [vmem:[#allocation2 + $0x38] sm:$0xf]
        %v798 = vld [vmem:[#allocation2 + $0x3c] sm:$0xf]
        %v799 = vld [vmem:[#allocation8] sm:$0xf]
        %v800 = vld [vmem:[#allocation8 + $0x4] sm:$0xf]
        %v801 = vld [vmem:[#allocation8 + $0x8] sm:$0xf]
        %v802 = vld [vmem:[#allocation8 + $0xc] sm:$0xf]
        %v803 = vld [vmem:[#allocation8 + $0x10] sm:$0xf]
        %v804 = vld [vmem:[#allocation8 + $0x14] sm:$0xf]
        %v805 = vld [vmem:[#allocation8 + $0x18] sm:$0xf]
        %v806 = vld [vmem:[#allocation8 + $0x1c] sm:$0xf]
        %v807 = vld [vmem:[#allocation8 + $0x20] sm:$0xf]
        %v808 = vld [vmem:[#allocation8 + $0x24] sm:$0xf]
        %v809 = vld [vmem:[#allocation8 + $0x28] sm:$0xf]
        %v810 = vld [vmem:[#allocation8 + $0x2c] sm:$0xf]
        %v811 = vld [vmem:[#allocation8 + $0x30] sm:$0xf]
        %v812 = vld [vmem:[#allocation8 + $0x34] sm:$0xf]
        %v813 = vld [vmem:[#allocation8 + $0x38] sm:$0xf]
        %v814 = vld [vmem:[#allocation8 + $0x3c] sm:$0xf]
        %v815 = vld [vmem:[%s314] sm:$0x1]
        %v817 = vperm.slane %v815, 0
        %v835 = vunpack.c.l.b16 %v783
        %v836 = vunpack.c.l.b16 %v784
        %v837 = vunpack.c.l.b16 %v785
        %v838 = vunpack.c.l.b16 %v786
        %v839 = vunpack.c.l.b16 %v787
        %v840 = vunpack.c.l.b16 %v788
        %v841 = vunpack.c.l.b16 %v789
        %v842 = vunpack.c.l.b16 %v790
        %v843 = vunpack.c.l.b16 %v791
        %v844 = vunpack.c.l.b16 %v792
        %v845 = vunpack.c.l.b16 %v793
        %v846 = vunpack.c.l.b16 %v794
        %v847 = vunpack.c.l.b16 %v795
        %v848 = vunpack.c.l.b16 %v796
        %v849 = vunpack.c.l.b16 %v797
        %v850 = vunpack.c.l.b16 %v798
        %v851 = vpack.c.b16 %v836, %v835
        %v852 = vpack.c.b16 %v838, %v837
        %v853 = vpack.c.b16 %v840, %v839
        %v854 = vpack.c.b16 %v842, %v841
        %v855 = vpack.c.b16 %v844, %v843
        %v856 = vpack.c.b16 %v846, %v845
        %v857 = vpack.c.b16 %v848, %v847
        %v858 = vpack.c.b16 %v850, %v849
        %v883 = vunpack.c.l.b16 %v799
        %v884 = vunpack.c.l.b16 %v800
        %v885 = vunpack.c.l.b16 %v801
        %v886 = vunpack.c.l.b16 %v802
        %v887 = vunpack.c.l.b16 %v803
        %v888 = vunpack.c.l.b16 %v804
        %v889 = vunpack.c.l.b16 %v805
        %v890 = vunpack.c.l.b16 %v806
        %v891 = vunpack.c.l.b16 %v807
        %v892 = vunpack.c.l.b16 %v808
        %v893 = vunpack.c.l.b16 %v809
        %v894 = vunpack.c.l.b16 %v810
        %v895 = vunpack.c.l.b16 %v811
        %v896 = vunpack.c.l.b16 %v812
        %v897 = vunpack.c.l.b16 %v813
        %v898 = vunpack.c.l.b16 %v814
        %v899 = vpack.c.b16 %v884, %v883
        %v900 = vpack.c.b16 %v886, %v885
        %v901 = vpack.c.b16 %v888, %v887
        %v902 = vpack.c.b16 %v890, %v889
        %v903 = vpack.c.b16 %v892, %v891
        %v904 = vpack.c.b16 %v894, %v893
        %v905 = vpack.c.b16 %v896, %v895
        %v906 = vpack.c.b16 %v898, %v897
        %915 = vmatpush.bf16.msra.mxu0 %v906
        %916 = vmatpush.bf16.msra.mxu0 %v905
        %917 = vmatpush.bf16.msra.mxu0 %v904
        %918 = vmatpush.bf16.msra.mxu0 %v903
        %919 = vmatpush.bf16.msra.mxu0 %v902
        %920 = vmatpush.bf16.msra.mxu0 %v901
        %921 = vmatpush.bf16.msra.mxu0 %v900
        %922 = vmatpush.bf16.msra.mxu0 %v899
        %923 = vmatmul.bf16.gmra.mxu0 %v851
        %v924 = vpop.f32.mrf.mxu0
        %v925 = vadd.f32 %v817, %v924
        %v926 = vpop.f32.mrf.mxu0
        %v927 = vadd.f32 %v817, %v926
        %928 = vmatmul.bf16.gmra.mxu0 %v852
        %v929 = vpop.f32.mrf.mxu0
        %v930 = vadd.f32 %v817, %v929
        %v931 = vpop.f32.mrf.mxu0
        %v932 = vadd.f32 %v817, %v931
        %933 = vmatmul.bf16.gmra.mxu0 %v853
        %v934 = vpop.f32.mrf.mxu0
        %v935 = vadd.f32 %v817, %v934
        %v936 = vpop.f32.mrf.mxu0
        %v937 = vadd.f32 %v817, %v936
        %938 = vmatmul.bf16.gmra.mxu0 %v854
        %v939 = vpop.f32.mrf.mxu0
        %v940 = vadd.f32 %v817, %v939
        %v941 = vpop.f32.mrf.mxu0
        %v942 = vadd.f32 %v817, %v941
        %943 = vmatmul.bf16.gmra.mxu0 %v855
        %v944 = vpop.f32.mrf.mxu0
        %v945 = vadd.f32 %v817, %v944
        %v946 = vpop.f32.mrf.mxu0
        %v947 = vadd.f32 %v817, %v946
        %948 = vmatmul.bf16.gmra.mxu0 %v856
        %v949 = vpop.f32.mrf.mxu0
        %v950 = vadd.f32 %v817, %v949
        %v951 = vpop.f32.mrf.mxu0
        %v952 = vadd.f32 %v817, %v951
        %953 = vmatmul.bf16.gmra.mxu0 %v857
        %v954 = vpop.f32.mrf.mxu0
        %v955 = vadd.f32 %v817, %v954
        %v956 = vpop.f32.mrf.mxu0
        %v957 = vadd.f32 %v817, %v956
        %958 = vmatmul.bf16.gmra.mxu0 %v858
        %v959 = vpop.f32.mrf.mxu0
        %v960 = vadd.f32 %v817, %v959
        %v961 = vpop.f32.mrf.mxu0
        %v962 = vadd.f32 %v817, %v961
        %963 = vdwg.mxu0
        %964 = vst [vmem:[%s310] sm:$0xff] %v925
        %965 = vst [vmem:[%s310 + $0x8] sm:$0xff] %v927
        %966 = vst [vmem:[%s310 + $0x10] sm:$0xff] %v930
        %967 = vst [vmem:[%s310 + $0x18] sm:$0xff] %v932
        %968 = vst [vmem:[%s310 + $0x20] sm:$0xff] %v935
        %969 = vst [vmem:[%s310 + $0x28] sm:$0xff] %v937
        %970 = vst [vmem:[%s310 + $0x30] sm:$0xff] %v940
        %971 = vst [vmem:[%s310 + $0x38] sm:$0xff] %v942
        %972 = vst [vmem:[%s310 + $0x40] sm:$0xff] %v945
        %973 = vst [vmem:[%s310 + $0x48] sm:$0xff] %v947
        %974 = vst [vmem:[%s310 + $0x50] sm:$0xff] %v950
        %975 = vst [vmem:[%s310 + $0x58] sm:$0xff] %v952
        %976 = vst [vmem:[%s310 + $0x60] sm:$0xff] %v955
        %977 = vst [vmem:[%s310 + $0x68] sm:$0xff] %v957
        %978 = vst [vmem:[%s310 + $0x70] sm:$0xff] %v960
        %979 = vst [vmem:[%s310 + $0x78] sm:$0xff] %v962
        %s980 = sand.u32 %s165, 1
        %s981 = scalar_lea.sflag [#allocation5], %s980
        %s982 = sand.u32 %s165, 1
        %s983 = smul.addr %s982, 128
        %s984 = scalar_lea.vmem [#allocation9], %s983
        // Predicated region
        $region57: #{tpu_custom_call.1} parent=39 // pred_check
          %p985 = pneg %p175
        $region58: #{tpu_custom_call.1} parent=39 // pred_check_branch
          %987 = sbr.rel (%p985) target = $region60
        $region59: #{tpu_custom_call.1} parent=39 // pred_region
          %s988 = smul.u32 16, %s27
          %990 = vsyncadd %s981, 0
          %s991 = sadd.s32 %s28, %s988
          %s992 = smul.addr %s991, 8
          %s993 = scalar_lea.hbm %s5, %s992
          %s994 = sshll.u32 %s984, 4
          %s995 = int_to_ptr.vmem [resolvable:$true] %s994
          %s996 = sshll.u32 %s993, 4
          %s997 = int_to_ptr.hbm [resolvable:$true] %s996
          %1002 = dma.vmem_to_hbm [thread:$0]  %s995, 2048, %s997, %s981, 128, 128, 8
        $region60: #{tpu_custom_call.1} parent=39 // pred_fallthru
          _
      $region40: #{tpu_custom_call.1} parent=5 // pred_fallthru
        _
      %p1003 = scmp.le.s32.totalorder 2, %s18
      // Predicated region
      $region61: #{tpu_custom_call.1} parent=5 // pred_check
        %p1004 = pneg %p1003
      $region62: #{tpu_custom_call.1} parent=5 // pred_check_branch
        %1006 = sbr.rel (%p1004) target = $region64
      $region63: #{tpu_custom_call.1} parent=5 // pred_region
        %s1007 = ssub.s32 %s18, 2
        // Predicated region
        $region65: #{tpu_custom_call.1} parent=63 // pred_check
          %p1008 = pneg %p181
        $region66: #{tpu_custom_call.1} parent=63 // pred_check_branch
          %1010 = sbr.rel (%p1008) target = $region68
        $region67: #{tpu_custom_call.1} parent=63 // pred_region
          %s1011 = sand.u32 %s166, 1
          %s1012 = scalar_lea.sflag [#allocation5], %s1011
          %s1013 = sand.u32 %s166, 1
          %s1014 = smul.addr %s1013, 128
          %s1015 = scalar_lea.vmem [#allocation9], %s1014
          %1017 = dma.done %s1012, 2048
        $region68: #{tpu_custom_call.1} parent=63 // pred_fallthru
          _
      $region64: #{tpu_custom_call.1} parent=5 // pred_fallthru
        _
    $region6: #{tpu_custom_call.1} parent=1 // loop_footer
      %s22 = sadd.s32 1, %s18
    $region7: #{tpu_custom_call.1} parent=1 // loop_footer_branch
      %17 = sbr.rel target = $region3
    $region8: #{tpu_custom_call.1} parent=1 // loop_exit
      _
    %1018 = vsyncpa [#allocation4], 1
    %s1019 = scalar_lea.sflag [#allocation4], 1
    %1020 = vsyncpa %s1019, 1
    %1021 = vsyncpa [#allocation7], 1
    %1022 = vsyncpa [#allocation5], 1
    %s1023 = scalar_lea.sflag [#allocation5], 1
    %1024 = vsyncpa %s1023, 1

</llo_original>
